<compile_context>
chip_gen: v7x
topology: tpu7x:2x2x1
jax: 0.10.0
libtpu: 0.0.40
codegen_flags: <defaults>
</compile_context>

<pallas_src>
import functools

import jax
import jax.numpy as jnp
from jax.experimental import pallas as pl
from jax.experimental.pallas import tpu as pltpu


def _round_up(x, m):
    return ((x + m - 1) // m) * m


def _cdiv(a, b):
    return (a + b - 1) // b


def _pad2d(x, rows, cols):
    return jnp.pad(x, ((0, rows - x.shape[0]), (0, cols - x.shape[1])))


def _adaptive_embedding_kernel(n_clusters, use_proj, emb_scale, t_tile, *refs):
    """Gather + project one block of `t_tile` tokens.

    refs layout:
      [local_smem, cluster_smem, counts_smem,          # scalar prefetch (SMEM)
       cluster_col,                                    # (t_tile, 1) int32 block
       proj_0..proj_{P-1},                             # bf16 (n_emb_pad_c, d_proj_pad)
       tbl_0..tbl_{C-1},                               # f32 HBM tables (pl.ANY)
       out,                                            # (t_tile, d_proj_pad) block
       gbuf_0..gbuf_{C-1}, sem]                        # VMEM scratch + DMA sems
    """
    n_proj = n_clusters if use_proj else 0
    i = 0
    loc_smem = refs[i]; i += 1
    clu_smem = refs[i]; i += 1
    cnt_smem = refs[i]; i += 1
    clu_col_ref = refs[i]; i += 1
    proj_refs = refs[i:i + n_proj]; i += n_proj
    tbl_refs = refs[i:i + n_clusters]; i += n_clusters
    out_ref = refs[i]; i += 1
    gbuf_refs = refs[i:i + n_clusters]; i += n_clusters
    sem = refs[i]

    blk = pl.program_id(0)
    base = blk * t_tile

    # ---- Phase 1: every token issues exactly ONE row-gather DMA, routed to
    # its own cluster's table.  Total gather DMAs per block == t_tile.
    @pl.loop(0, t_tile)
    def _issue(t):
        c_t = clu_smem[base + t]
        row = loc_smem[base + t]
        for c in range(n_clusters):
            @pl.when(c_t == c)
            def _(c=c):
                pltpu.make_async_copy(
                    tbl_refs[c].at[pl.ds(row, 1), :],
                    gbuf_refs[c].at[pl.ds(t, 1), :],
                    sem.at[c],
                ).start()

    # Zero the (VMEM-resident) output block while the gathers are in flight.
    out_ref[...] = jnp.zeros_like(out_ref)
    clu_col = clu_col_ref[...]                                # (t_tile, 1) int32

    # ---- Phase 2: per cluster, drain exactly the DMAs that were issued for it
    # (issued-count scheme) and merge its projected rows into the output block.
    def consume(c):
        cnt = cnt_smem[blk * n_clusters + c]

        @pl.when(cnt > 0)
        def _():
            # `cnt` waits, each sized to one gathered row, on this cluster's
            # dedicated DMA semaphore -> always consistent with the issue side.
            @pl.loop(0, cnt)
            def _wait(_):
                pltpu.make_async_copy(
                    tbl_refs[c].at[pl.ds(0, 1), :],
                    gbuf_refs[c].at[pl.ds(0, 1), :],
                    sem.at[c],
                ).wait()

            rows = gbuf_refs[c][...]                          # (t_tile, n_emb_pad_c) f32
            if use_proj:
                contrib = jnp.dot(rows.astype(jnp.bfloat16), proj_refs[c][...],
                                  preferred_element_type=jnp.float32)
            else:
                contrib = rows                                # d_proj == n_embed: no proj
            mask = clu_col == c                               # (t_tile, 1) bool
            out_ref[...] = jnp.where(
                mask, (contrib * emb_scale).astype(out_ref.dtype), out_ref[...])

    for c in range(n_clusters):
        consume(c)


class AdaptiveEmbedding:
    """JAX/Pallas port of the PyTorch AdaptiveEmbedding forward pass."""

    def __init__(self, vocab_size, n_embed, d_proj, cutoffs, div_val=1,
                 out_dtype=jnp.float32, key=jax.random.PRNGKey(0)):
        self.n_token = vocab_size
        self.n_embed = n_embed
        self.d_proj = d_proj
        self.div_val = div_val
        self.cutoffs = list(cutoffs) + [vocab_size]
        self.cutoff_ends = [0] + self.cutoffs
        self.emb_scale = float(d_proj) ** 0.5
        self.out_dtype = out_dtype
        self.d_proj_pad = _round_up(d_proj, 128)

        self.emb_tables = []    # f32 (V_pad_c, n_emb_pad_c); stay in HBM (pl.ANY)
        self.emb_projs_t = []   # bf16 (n_emb_pad_c, d_proj_pad), pre-transposed
        self.bounds = []        # (l_idx, r_idx) per cluster
        self.n_emb_pads = []

        if div_val == 1:
            k1, k2 = jax.random.split(key)
            n_emb_pad = _round_up(n_embed, 128)
            tbl = jax.random.normal(k1, (vocab_size, n_embed), jnp.float32) * 0.02
            tbl = tbl.astype(jnp.bfloat16).astype(jnp.float32)   # bf16-exact values
            self.emb_tables.append(_pad2d(tbl, _round_up(vocab_size, 8), n_emb_pad))
            self.bounds.append((0, vocab_size))
            self.n_emb_pads.append(n_emb_pad)
            self.use_proj = d_proj != n_embed
            if self.use_proj:
                prj = jax.random.normal(k2, (d_proj, n_embed), jnp.float32) * 0.02
                self.emb_projs_t.append(
                    _pad2d(prj.T, n_emb_pad, self.d_proj_pad).astype(jnp.bfloat16))
            else:
                # torch applies no projection here; skip the identity matmul.
                assert n_emb_pad == self.d_proj_pad
        else:
            self.use_proj = True
            keys = jax.random.split(key, 2 * len(self.cutoffs))
            for i in range(len(self.cutoffs)):
                l_idx, r_idx = self.cutoff_ends[i], self.cutoff_ends[i + 1]
                n_emb_i = n_embed // (div_val ** i)
                n_emb_pad = _round_up(n_emb_i, 128)
                tbl = jax.random.normal(
                    keys[2 * i], (r_idx - l_idx, n_emb_i), jnp.float32) * 0.02
                tbl = tbl.astype(jnp.bfloat16).astype(jnp.float32)
                prj = jax.random.normal(
                    keys[2 * i + 1], (d_proj, n_emb_i), jnp.float32) * 0.02
                self.emb_tables.append(
                    _pad2d(tbl, _round_up(r_idx - l_idx, 8), n_emb_pad))
                self.emb_projs_t.append(
                    _pad2d(prj.T, n_emb_pad, self.d_proj_pad).astype(jnp.bfloat16))
                self.bounds.append((l_idx, r_idx))
                self.n_emb_pads.append(n_emb_pad)

        self.n_clusters = len(self.emb_tables)

    # ---------------------------------------------------------------- planning
    def _plan(self, t):
        """Pick t_tile + vmem_limit from the actual VMEM capacity."""
        try:
            vmem_cap = int(pltpu.get_tpu_info().vmem_capacity_bytes)
        except Exception:
            vmem_cap = 64 * 1024 * 1024            # v7x-conservative fallback
        out_bytes = jnp.dtype(self.out_dtype).itemsize
        # Projections are double-buffered by the pipeline even though their
        # block index never changes; budget for 2x of them.
        fixed = 2 * sum(int(p.size) * 2 for p in self.emb_projs_t)
        per_token = (sum(4 * n for n in self.n_emb_pads)      # f32 gather buffers
                     + 2 * out_bytes * self.d_proj_pad        # dbl-buffered out blk
                     + 2 * 4 * 128)                           # dbl-buffered cluster col
        budget = int(0.35 * vmem_cap)
        t_tile = 8
        for cand in (1024, 512, 256, 128, 64, 32, 16, 8):
            if fixed + cand * per_token <= budget:
                t_tile = cand
                break
        # Keep >= 2 grid blocks so both TensorCores get work on dual-TC parts.
        t_tile = min(t_tile, max(8, _round_up(_cdiv(t, 2), 8)))
        est = fixed + t_tile * per_token + (8 << 20)          # + compiler headroom
        vmem_limit = int(min(vmem_cap, max(est, 32 << 20)))
        return t_tile, vmem_limit

    # ---------------------------------------------------------------- forward
    def __call__(self, inp):
        b, s = inp.shape
        t = b * s
        t_tile, vmem_limit = self._plan(t)
        t_pad = _round_up(t, t_tile)
        n_blocks = t_pad // t_tile

        ids = jnp.pad(jnp.ravel(inp).astype(jnp.int32), (0, t_pad - t))

        # Route every token to exactly one cluster (host/XLA side, cheap).
        starts = [l for (l, _) in self.bounds]
        if self.n_clusters > 1:
            th = jnp.asarray(starts[1:], jnp.int32)
            cluster_of = jnp.sum((ids[:, None] >= th[None, :]).astype(jnp.int32),
                                 axis=1).astype(jnp.int32)
        else:
            cluster_of = jnp.zeros_like(ids)
        local = (ids - jnp.asarray(starts, jnp.int32)[cluster_of]).astype(jnp.int32)

        # Per-(block, cluster) token counts == exact number of gather DMAs the
        # kernel must wait for; lets empty clusters skip all work in a block.
        clu_blocks = cluster_of.reshape(n_blocks, t_tile)
        counts = jnp.stack(
            [jnp.sum((clu_blocks == c).astype(jnp.int32), axis=1)
             for c in range(self.n_clusters)],
            axis=1).astype(jnp.int32).reshape(-1)

        cluster_col = cluster_of.reshape(t_pad, 1)

        kernel = functools.partial(
            _adaptive_embedding_kernel, self.n_clusters, self.use_proj,
            self.emb_scale, t_tile)

        def blk_idx(i, loc, clu, cnt):
            return (i, 0)

        def const_idx(i, loc, clu, cnt):
            return (0, 0)

        in_specs = (
            [pl.BlockSpec((t_tile, 1), blk_idx)]
            # TODO(synk): pipeline_mode=pl.Buffered(1) on the constant-index
            # projection blocks to reclaim their double-buffer VMEM on v7x.
            + [pl.BlockSpec(p.shape, const_idx) for p in self.emb_projs_t]
            + [pl.BlockSpec(memory_space=pl.ANY)] * self.n_clusters)
        out_spec = pl.BlockSpec((t_tile, self.d_proj_pad), blk_idx)
        scratch_shapes = (
            [pltpu.VMEM((t_tile, n), jnp.float32) for n in self.n_emb_pads]
            + [pltpu.SemaphoreType.DMA((self.n_clusters,))])

        out_pad = pl.pallas_call(
            kernel,
            out_shape=jax.ShapeDtypeStruct((t_pad, self.d_proj_pad),
                                           self.out_dtype),
            grid_spec=pltpu.PrefetchScalarGridSpec(
                num_scalar_prefetch=3,
                grid=(n_blocks,),
                in_specs=in_specs,
                out_specs=out_spec,
                scratch_shapes=scratch_shapes),
            compiler_params=pltpu.CompilerParams(
                dimension_semantics=("parallel",),
                vmem_limit_bytes=vmem_limit),
        )(local, cluster_of, counts, cluster_col,
          *self.emb_projs_t, *self.emb_tables)

        return out_pad[:t, :self.d_proj].reshape(b, s, self.d_proj)


def _reference(module, inp):
    """Pure-JAX reference replicating the PyTorch per-cluster index_copy_."""
    flat = jnp.ravel(inp).astype(jnp.int32)
    out = jnp.zeros((flat.shape[0], module.d_proj_pad), jnp.float32)
    for c, (l_idx, r_idx) in enumerate(module.bounds):
        mask = (flat >= l_idx) & (flat < r_idx)
        local = jnp.clip(flat - l_idx, 0, module.emb_tables[c].shape[0] - 1)
        e = module.emb_tables[c][local]                           # (T, n_emb_pad)
        if module.use_proj:
            e = jnp.dot(e, module.emb_projs_t[c].astype(jnp.float32),
                        precision="highest")                      # (T, d_proj_pad)
        out = jnp.where(mask[:, None], e, out)
    out = out * module.emb_scale
    return out[:, :module.d_proj].reshape(*inp.shape, module.d_proj)


if __name__ == "__main__":
    vocab_size = 32
    n_embed = 32
    d_proj = 32
    cutoffs = [16, 24]
    div_val = 2
    batch, seq = 2, 8

    key = jax.random.PRNGKey(0)
    k_param, k_inp = jax.random.split(key)

    module = AdaptiveEmbedding(vocab_size, n_embed, d_proj, cutoffs,
                               div_val=div_val, key=k_param)
    inp = jax.random.randint(k_inp, (batch, seq), 0, vocab_size, dtype=jnp.int32)

    out = jax.block_until_ready(module(inp))
    ref = _reference(module, inp)

    assert out.shape == (batch, seq, d_proj), out.shape
    assert jnp.allclose(out, ref.astype(out.dtype), atol=2e-3, rtol=2e-3), \
        float(jnp.max(jnp.abs(out.astype(jnp.float32) - ref)))

    print("KERNEL_OK")
</pallas_src>

<mosaic_0001>
module attributes {stable_mosaic.version = 11 : i64} {
  func.func @_adaptive_embedding_kernel(%arg0: i32, %arg1: memref<16xi32, #tpu.memory_space<smem>>, %arg2: memref<16xi32, #tpu.memory_space<smem>>, %arg3: memref<6xi32, #tpu.memory_space<smem>>, %arg4: memref<8x1xi32, #tpu.memory_space<vmem>>, %arg5: memref<128x128xbf16, #tpu.memory_space<vmem>>, %arg6: memref<128x128xbf16, #tpu.memory_space<vmem>>, %arg7: memref<128x128xbf16, #tpu.memory_space<vmem>>, %arg8: memref<16x128xf32, #tpu.memory_space<any>>, %arg9: memref<8x128xf32, #tpu.memory_space<any>>, %arg10: memref<8x128xf32, #tpu.memory_space<any>>, %arg11: memref<8x128xf32, #tpu.memory_space<vmem>>, %arg12: memref<8x128xf32, #tpu.memory_space<vmem>>, %arg13: memref<8x128xf32, #tpu.memory_space<vmem>>, %arg14: memref<8x128xf32, #tpu.memory_space<vmem>>, %arg15: memref<3x!tpu.dma_semaphore, #tpu.memory_space<semaphore_mem>>) attributes {dimension_semantics = [#tpu.dimension_semantics<parallel>], iteration_bounds = array<i64: 2>, scalar_prefetch = 3 : i64, scratch_operands = 4 : i64, tpu.core_type = #tpu.core_type<tc>, window_params = [{transform_indices = @transform_0, window_bounds = array<i64: 8, 1>}, {pipeline_mode = #tpu.pipeline_mode<synchronous>, transform_indices = @transform_1, window_bounds = array<i64: 128, 128>}, {pipeline_mode = #tpu.pipeline_mode<synchronous>, transform_indices = @transform_2, window_bounds = array<i64: 128, 128>}, {pipeline_mode = #tpu.pipeline_mode<synchronous>, transform_indices = @transform_3, window_bounds = array<i64: 128, 128>}, {}, {}, {}, {transform_indices = @transform_7, window_bounds = array<i64: 8, 128>}]} {
    %c8_i32 = arith.constant 8 : i32
    %0 = arith.muli %arg0, %c8_i32 : i32
    %c0_i32 = arith.constant 0 : i32
    %c8_i32_0 = arith.constant 8 : i32
    %1 = arith.addi %c0_i32, %c8_i32_0 : i32
    %c1_i32 = arith.constant 1 : i32
    scf.for %arg16 = %c0_i32 to %1 step %c1_i32  : i32 {
      %c1_i32_15 = arith.constant 1 : i32
      %26 = arith.muli %arg16, %c1_i32_15 : i32
      %c0_i32_16 = arith.constant 0 : i32
      %27 = arith.addi %c0_i32_16, %26 : i32
      %28 = arith.addi %0, %27 : i32
      %29 = arith.index_cast %28 : i32 to index
      %30 = memref.load %arg2[%29] : memref<16xi32, #tpu.memory_space<smem>>
      %31 = arith.addi %0, %27 : i32
      %32 = arith.index_cast %31 : i32 to index
      %33 = memref.load %arg1[%32] : memref<16xi32, #tpu.memory_space<smem>>
      %c0_i32_17 = arith.constant 0 : i32
      %34 = arith.cmpi eq, %30, %c0_i32_17 : i32
      %35 = arith.extui %34 : i1 to i32
      %c0_i32_18 = arith.constant 0 : i32
      %36 = arith.cmpi ne, %35, %c0_i32_18 : i32
      scf.if %36 {
        %c0_i32_23 = arith.constant 0 : i32
        %c0_i32_24 = arith.constant 0 : i32
        %43 = tpu.memref_slice %arg8[%33, %c0_i32_24] : memref<16x128xf32, #tpu.memory_space<any>> -> memref<1x128xf32, #tpu.memory_space<any>>
        %c0_i32_25 = arith.constant 0 : i32
        %44 = tpu.memref_slice %arg12[%27, %c0_i32_25] : memref<8x128xf32, #tpu.memory_space<vmem>> -> memref<1x128xf32, #tpu.memory_space<vmem>>
        %45 = tpu.memref_slice %arg15[%c0_i32_23] : memref<3x!tpu.dma_semaphore, #tpu.memory_space<semaphore_mem>> -> memref<1x!tpu.dma_semaphore, #tpu.memory_space<semaphore_mem>>
        %46 = tpu.memref_squeeze %45 : memref<1x!tpu.dma_semaphore, #tpu.memory_space<semaphore_mem>> -> memref<!tpu.dma_semaphore, #tpu.memory_space<semaphore_mem>>
        tpu.enqueue_dma source(%43 : memref<1x128xf32, #tpu.memory_space<any>>) target(%44 : memref<1x128xf32, #tpu.memory_space<vmem>>) target_semaphore(%46 : memref<!tpu.dma_semaphore, #tpu.memory_space<semaphore_mem>>)
      } else {
      }
      %c1_i32_19 = arith.constant 1 : i32
      %37 = arith.cmpi eq, %30, %c1_i32_19 : i32
      %38 = arith.extui %37 : i1 to i32
      %c0_i32_20 = arith.constant 0 : i32
      %39 = arith.cmpi ne, %38, %c0_i32_20 : i32
      scf.if %39 {
        %c1_i32_23 = arith.constant 1 : i32
        %c0_i32_24 = arith.constant 0 : i32
        %43 = tpu.memref_slice %arg9[%33, %c0_i32_24] : memref<8x128xf32, #tpu.memory_space<any>> -> memref<1x128xf32, #tpu.memory_space<any>>
        %c0_i32_25 = arith.constant 0 : i32
        %44 = tpu.memref_slice %arg13[%27, %c0_i32_25] : memref<8x128xf32, #tpu.memory_space<vmem>> -> memref<1x128xf32, #tpu.memory_space<vmem>>
        %45 = tpu.memref_slice %arg15[%c1_i32_23] : memref<3x!tpu.dma_semaphore, #tpu.memory_space<semaphore_mem>> -> memref<1x!tpu.dma_semaphore, #tpu.memory_space<semaphore_mem>>
        %46 = tpu.memref_squeeze %45 : memref<1x!tpu.dma_semaphore, #tpu.memory_space<semaphore_mem>> -> memref<!tpu.dma_semaphore, #tpu.memory_space<semaphore_mem>>
        tpu.enqueue_dma source(%43 : memref<1x128xf32, #tpu.memory_space<any>>) target(%44 : memref<1x128xf32, #tpu.memory_space<vmem>>) target_semaphore(%46 : memref<!tpu.dma_semaphore, #tpu.memory_space<semaphore_mem>>)
      } else {
      }
      %c2_i32_21 = arith.constant 2 : i32
      %40 = arith.cmpi eq, %30, %c2_i32_21 : i32
      %41 = arith.extui %40 : i1 to i32
      %c0_i32_22 = arith.constant 0 : i32
      %42 = arith.cmpi ne, %41, %c0_i32_22 : i32
      scf.if %42 {
        %c2_i32_23 = arith.constant 2 : i32
        %c0_i32_24 = arith.constant 0 : i32
        %43 = tpu.memref_slice %arg10[%33, %c0_i32_24] : memref<8x128xf32, #tpu.memory_space<any>> -> memref<1x128xf32, #tpu.memory_space<any>>
        %c0_i32_25 = arith.constant 0 : i32
        %44 = tpu.memref_slice %arg14[%27, %c0_i32_25] : memref<8x128xf32, #tpu.memory_space<vmem>> -> memref<1x128xf32, #tpu.memory_space<vmem>>
        %45 = tpu.memref_slice %arg15[%c2_i32_23] : memref<3x!tpu.dma_semaphore, #tpu.memory_space<semaphore_mem>> -> memref<1x!tpu.dma_semaphore, #tpu.memory_space<semaphore_mem>>
        %46 = tpu.memref_squeeze %45 : memref<1x!tpu.dma_semaphore, #tpu.memory_space<semaphore_mem>> -> memref<!tpu.dma_semaphore, #tpu.memory_space<semaphore_mem>>
        tpu.enqueue_dma source(%43 : memref<1x128xf32, #tpu.memory_space<any>>) target(%44 : memref<1x128xf32, #tpu.memory_space<vmem>>) target_semaphore(%46 : memref<!tpu.dma_semaphore, #tpu.memory_space<semaphore_mem>>)
      } else {
      }
    }
    %c8_i32_1 = arith.constant 8 : i32
    %cst = arith.constant 0.000000e+00 : f32
    %2 = vector.broadcast %cst : f32 to vector<8x128xf32>
    %c0 = arith.constant 0 : index
    %c0_2 = arith.constant 0 : index
    %3 = vector.load %arg11[%c0, %c0_2] : memref<8x128xf32, #tpu.memory_space<vmem>>, vector<8x128xf32>
    tpu.vector_store %arg11[%c0, %c0_2], %2 {strides = array<i32>} : memref<8x128xf32, #tpu.memory_space<vmem>>, vector<8x128xf32>,
    %c0_3 = arith.constant 0 : index
    %c0_4 = arith.constant 0 : index
    %4 = vector.load %arg4[%c0_3, %c0_4] : memref<8x1xi32, #tpu.memory_space<vmem>>, vector<8x1xi32>
    %c3_i32 = arith.constant 3 : i32
    %5 = arith.muli %arg0, %c3_i32 : i32
    %c0_i32_5 = arith.constant 0 : i32
    %6 = arith.addi %5, %c0_i32_5 : i32
    %7 = arith.index_cast %6 : i32 to index
    %8 = memref.load %arg3[%7] : memref<6xi32, #tpu.memory_space<smem>>
    %c0_i32_6 = arith.constant 0 : i32
    %9 = arith.cmpi sgt, %8, %c0_i32_6 : i32
    %10 = arith.extui %9 : i1 to i32
    %c0_i32_7 = arith.constant 0 : i32
    %11 = arith.cmpi ne, %10, %c0_i32_7 : i32
    scf.if %11 {
      %c0_i32_15 = arith.constant 0 : i32
      %26 = arith.subi %8, %c0_i32_15 : i32
      %c1_i32_16 = arith.constant 1 : i32
      %c1_i32_17 = arith.constant 1 : i32
      %27 = arith.subi %c1_i32_16, %c1_i32_17 : i32
      %28 = arith.addi %26, %27 : i32
      %c1_i32_18 = arith.constant 1 : i32
      %29 = arith.divsi %28, %c1_i32_18 : i32
      %c1_i32_19 = arith.constant 1 : i32
      %c0_i32_20 = arith.constant 0 : i32
      %c0_i32_21 = arith.constant 0 : i32
      %30 = arith.subi %29, %c0_i32_21 : i32
      %31 = arith.addi %c0_i32_21, %30 : i32
      %c1_i32_22 = arith.constant 1 : i32
      scf.for %arg16 = %c0_i32_21 to %31 step %c1_i32_22  : i32 {
        %45 = arith.muli %arg16, %c1_i32_19 : i32
        %46 = arith.addi %c0_i32_20, %45 : i32
        %c0_i32_34 = arith.constant 0 : i32
        %c0_i32_35 = arith.constant 0 : i32
        %c0_i32_36 = arith.constant 0 : i32
        %47 = tpu.memref_slice %arg8[%c0_i32_35, %c0_i32_36] : memref<16x128xf32, #tpu.memory_space<any>> -> memref<1x128xf32, #tpu.memory_space<any>>
        %c0_i32_37 = arith.constant 0 : i32
        %c0_i32_38 = arith.constant 0 : i32
        %48 = tpu.memref_slice %arg12[%c0_i32_37, %c0_i32_38] : memref<8x128xf32, #tpu.memory_space<vmem>> -> memref<1x128xf32, #tpu.memory_space<vmem>>
        %49 = tpu.memref_slice %arg15[%c0_i32_34] : memref<3x!tpu.dma_semaphore, #tpu.memory_space<semaphore_mem>> -> memref<1x!tpu.dma_semaphore, #tpu.memory_space<semaphore_mem>>
        %50 = tpu.memref_squeeze %49 : memref<1x!tpu.dma_semaphore, #tpu.memory_space<semaphore_mem>> -> memref<!tpu.dma_semaphore, #tpu.memory_space<semaphore_mem>>
        tpu.wait_dma2 semaphore(%50 : memref<!tpu.dma_semaphore, #tpu.memory_space<semaphore_mem>>) src(%47 : memref<1x128xf32, #tpu.memory_space<any>>) dst(%48 : memref<1x128xf32, #tpu.memory_space<vmem>>)
      }
      %c0_23 = arith.constant 0 : index
      %c0_24 = arith.constant 0 : index
      %32 = vector.load %arg12[%c0_23, %c0_24] : memref<8x128xf32, #tpu.memory_space<vmem>>, vector<8x128xf32>
      %33 = arith.truncf %32 : vector<8x128xf32> to vector<8x128xbf16>
      %c0_25 = arith.constant 0 : index
      %c0_26 = arith.constant 0 : index
      %34 = vector.load %arg5[%c0_25, %c0_26] : memref<128x128xbf16, #tpu.memory_space<vmem>>, vector<128x128xbf16>
      %cst_27 = arith.constant dense<0.000000e+00> : vector<8x128xf32>
      %35 = tpu.matmul %33, %34, %cst_27 {dimension_numbers = #tpu.dot_dimension_numbers<[1], [0], [0], [1], [0, 0, 1, 1], [], []>} : vector<8x128xbf16>, vector<128x128xbf16>, vector<8x128xf32> -> vector<8x128xf32>
      %c0_i32_28 = arith.constant 0 : i32
      %36 = vector.broadcast %c0_i32_28 : i32 to vector<8x1xi32>
      %37 = arith.cmpi eq, %4, %36 : vector<8x1xi32>
      %cst_29 = arith.constant 5.65685415 : f32
      %38 = vector.broadcast %cst_29 : f32 to vector<8x128xf32>
      %39 = arith.mulf %35, %38 : vector<8x128xf32>
      %c0_30 = arith.constant 0 : index
      %c0_31 = arith.constant 0 : index
      %40 = vector.load %arg11[%c0_30, %c0_31] : memref<8x128xf32, #tpu.memory_space<vmem>>, vector<8x128xf32>
      %41 = vector.shape_cast %37 : vector<8x1xi1> to vector<8x1xi1>
      %42 = vector.broadcast %41 : vector<8x1xi1> to vector<8x128xi1>
      %43 = arith.select %42, %39, %40 : vector<8x128xi1>, vector<8x128xf32>
      %c0_32 = arith.constant 0 : index
      %c0_33 = arith.constant 0 : index
      %44 = vector.load %arg11[%c0_32, %c0_33] : memref<8x128xf32, #tpu.memory_space<vmem>>, vector<8x128xf32>
      tpu.vector_store %arg11[%c0_32, %c0_33], %43 {strides = array<i32>} : memref<8x128xf32, #tpu.memory_space<vmem>>, vector<8x128xf32>,
    } else {
    }
    %c3_i32_8 = arith.constant 3 : i32
    %12 = arith.muli %arg0, %c3_i32_8 : i32
    %c1_i32_9 = arith.constant 1 : i32
    %13 = arith.addi %12, %c1_i32_9 : i32
    %14 = arith.index_cast %13 : i32 to index
    %15 = memref.load %arg3[%14] : memref<6xi32, #tpu.memory_space<smem>>
    %c0_i32_10 = arith.constant 0 : i32
    %16 = arith.cmpi sgt, %15, %c0_i32_10 : i32
    %17 = arith.extui %16 : i1 to i32
    %c0_i32_11 = arith.constant 0 : i32
    %18 = arith.cmpi ne, %17, %c0_i32_11 : i32
    scf.if %18 {
      %c0_i32_15 = arith.constant 0 : i32
      %26 = arith.subi %15, %c0_i32_15 : i32
      %c1_i32_16 = arith.constant 1 : i32
      %c1_i32_17 = arith.constant 1 : i32
      %27 = arith.subi %c1_i32_16, %c1_i32_17 : i32
      %28 = arith.addi %26, %27 : i32
      %c1_i32_18 = arith.constant 1 : i32
      %29 = arith.divsi %28, %c1_i32_18 : i32
      %c1_i32_19 = arith.constant 1 : i32
      %c0_i32_20 = arith.constant 0 : i32
      %c0_i32_21 = arith.constant 0 : i32
      %30 = arith.subi %29, %c0_i32_21 : i32
      %31 = arith.addi %c0_i32_21, %30 : i32
      %c1_i32_22 = arith.constant 1 : i32
      scf.for %arg16 = %c0_i32_21 to %31 step %c1_i32_22  : i32 {
        %45 = arith.muli %arg16, %c1_i32_19 : i32
        %46 = arith.addi %c0_i32_20, %45 : i32
        %c1_i32_34 = arith.constant 1 : i32
        %c0_i32_35 = arith.constant 0 : i32
        %c0_i32_36 = arith.constant 0 : i32
        %47 = tpu.memref_slice %arg9[%c0_i32_35, %c0_i32_36] : memref<8x128xf32, #tpu.memory_space<any>> -> memref<1x128xf32, #tpu.memory_space<any>>
        %c0_i32_37 = arith.constant 0 : i32
        %c0_i32_38 = arith.constant 0 : i32
        %48 = tpu.memref_slice %arg13[%c0_i32_37, %c0_i32_38] : memref<8x128xf32, #tpu.memory_space<vmem>> -> memref<1x128xf32, #tpu.memory_space<vmem>>
        %49 = tpu.memref_slice %arg15[%c1_i32_34] : memref<3x!tpu.dma_semaphore, #tpu.memory_space<semaphore_mem>> -> memref<1x!tpu.dma_semaphore, #tpu.memory_space<semaphore_mem>>
        %50 = tpu.memref_squeeze %49 : memref<1x!tpu.dma_semaphore, #tpu.memory_space<semaphore_mem>> -> memref<!tpu.dma_semaphore, #tpu.memory_space<semaphore_mem>>
        tpu.wait_dma2 semaphore(%50 : memref<!tpu.dma_semaphore, #tpu.memory_space<semaphore_mem>>) src(%47 : memref<1x128xf32, #tpu.memory_space<any>>) dst(%48 : memref<1x128xf32, #tpu.memory_space<vmem>>)
      }
      %c0_23 = arith.constant 0 : index
      %c0_24 = arith.constant 0 : index
      %32 = vector.load %arg13[%c0_23, %c0_24] : memref<8x128xf32, #tpu.memory_space<vmem>>, vector<8x128xf32>
      %33 = arith.truncf %32 : vector<8x128xf32> to vector<8x128xbf16>
      %c0_25 = arith.constant 0 : index
      %c0_26 = arith.constant 0 : index
      %34 = vector.load %arg6[%c0_25, %c0_26] : memref<128x128xbf16, #tpu.memory_space<vmem>>, vector<128x128xbf16>
      %cst_27 = arith.constant dense<0.000000e+00> : vector<8x128xf32>
      %35 = tpu.matmul %33, %34, %cst_27 {dimension_numbers = #tpu.dot_dimension_numbers<[1], [0], [0], [1], [0, 0, 1, 1], [], []>} : vector<8x128xbf16>, vector<128x128xbf16>, vector<8x128xf32> -> vector<8x128xf32>
      %c1_i32_28 = arith.constant 1 : i32
      %36 = vector.broadcast %c1_i32_28 : i32 to vector<8x1xi32>
      %37 = arith.cmpi eq, %4, %36 : vector<8x1xi32>
      %cst_29 = arith.constant 5.65685415 : f32
      %38 = vector.broadcast %cst_29 : f32 to vector<8x128xf32>
      %39 = arith.mulf %35, %38 : vector<8x128xf32>
      %c0_30 = arith.constant 0 : index
      %c0_31 = arith.constant 0 : index
      %40 = vector.load %arg11[%c0_30, %c0_31] : memref<8x128xf32, #tpu.memory_space<vmem>>, vector<8x128xf32>
      %41 = vector.shape_cast %37 : vector<8x1xi1> to vector<8x1xi1>
      %42 = vector.broadcast %41 : vector<8x1xi1> to vector<8x128xi1>
      %43 = arith.select %42, %39, %40 : vector<8x128xi1>, vector<8x128xf32>
      %c0_32 = arith.constant 0 : index
      %c0_33 = arith.constant 0 : index
      %44 = vector.load %arg11[%c0_32, %c0_33] : memref<8x128xf32, #tpu.memory_space<vmem>>, vector<8x128xf32>
      tpu.vector_store %arg11[%c0_32, %c0_33], %43 {strides = array<i32>} : memref<8x128xf32, #tpu.memory_space<vmem>>, vector<8x128xf32>,
    } else {
    }
    %c3_i32_12 = arith.constant 3 : i32
    %19 = arith.muli %arg0, %c3_i32_12 : i32
    %c2_i32 = arith.constant 2 : i32
    %20 = arith.addi %19, %c2_i32 : i32
    %21 = arith.index_cast %20 : i32 to index
    %22 = memref.load %arg3[%21] : memref<6xi32, #tpu.memory_space<smem>>
    %c0_i32_13 = arith.constant 0 : i32
    %23 = arith.cmpi sgt, %22, %c0_i32_13 : i32
    %24 = arith.extui %23 : i1 to i32
    %c0_i32_14 = arith.constant 0 : i32
    %25 = arith.cmpi ne, %24, %c0_i32_14 : i32
    scf.if %25 {
      %c0_i32_15 = arith.constant 0 : i32
      %26 = arith.subi %22, %c0_i32_15 : i32
      %c1_i32_16 = arith.constant 1 : i32
      %c1_i32_17 = arith.constant 1 : i32
      %27 = arith.subi %c1_i32_16, %c1_i32_17 : i32
      %28 = arith.addi %26, %27 : i32
      %c1_i32_18 = arith.constant 1 : i32
      %29 = arith.divsi %28, %c1_i32_18 : i32
      %c1_i32_19 = arith.constant 1 : i32
      %c0_i32_20 = arith.constant 0 : i32
      %c0_i32_21 = arith.constant 0 : i32
      %30 = arith.subi %29, %c0_i32_21 : i32
      %31 = arith.addi %c0_i32_21, %30 : i32
      %c1_i32_22 = arith.constant 1 : i32
      scf.for %arg16 = %c0_i32_21 to %31 step %c1_i32_22  : i32 {
        %45 = arith.muli %arg16, %c1_i32_19 : i32
        %46 = arith.addi %c0_i32_20, %45 : i32
        %c2_i32_34 = arith.constant 2 : i32
        %c0_i32_35 = arith.constant 0 : i32
        %c0_i32_36 = arith.constant 0 : i32
        %47 = tpu.memref_slice %arg10[%c0_i32_35, %c0_i32_36] : memref<8x128xf32, #tpu.memory_space<any>> -> memref<1x128xf32, #tpu.memory_space<any>>
        %c0_i32_37 = arith.constant 0 : i32
        %c0_i32_38 = arith.constant 0 : i32
        %48 = tpu.memref_slice %arg14[%c0_i32_37, %c0_i32_38] : memref<8x128xf32, #tpu.memory_space<vmem>> -> memref<1x128xf32, #tpu.memory_space<vmem>>
        %49 = tpu.memref_slice %arg15[%c2_i32_34] : memref<3x!tpu.dma_semaphore, #tpu.memory_space<semaphore_mem>> -> memref<1x!tpu.dma_semaphore, #tpu.memory_space<semaphore_mem>>
        %50 = tpu.memref_squeeze %49 : memref<1x!tpu.dma_semaphore, #tpu.memory_space<semaphore_mem>> -> memref<!tpu.dma_semaphore, #tpu.memory_space<semaphore_mem>>
        tpu.wait_dma2 semaphore(%50 : memref<!tpu.dma_semaphore, #tpu.memory_space<semaphore_mem>>) src(%47 : memref<1x128xf32, #tpu.memory_space<any>>) dst(%48 : memref<1x128xf32, #tpu.memory_space<vmem>>)
      }
      %c0_23 = arith.constant 0 : index
      %c0_24 = arith.constant 0 : index
      %32 = vector.load %arg14[%c0_23, %c0_24] : memref<8x128xf32, #tpu.memory_space<vmem>>, vector<8x128xf32>
      %33 = arith.truncf %32 : vector<8x128xf32> to vector<8x128xbf16>
      %c0_25 = arith.constant 0 : index
      %c0_26 = arith.constant 0 : index
      %34 = vector.load %arg7[%c0_25, %c0_26] : memref<128x128xbf16, #tpu.memory_space<vmem>>, vector<128x128xbf16>
      %cst_27 = arith.constant dense<0.000000e+00> : vector<8x128xf32>
      %35 = tpu.matmul %33, %34, %cst_27 {dimension_numbers = #tpu.dot_dimension_numbers<[1], [0], [0], [1], [0, 0, 1, 1], [], []>} : vector<8x128xbf16>, vector<128x128xbf16>, vector<8x128xf32> -> vector<8x128xf32>
      %c2_i32_28 = arith.constant 2 : i32
      %36 = vector.broadcast %c2_i32_28 : i32 to vector<8x1xi32>
      %37 = arith.cmpi eq, %4, %36 : vector<8x1xi32>
      %cst_29 = arith.constant 5.65685415 : f32
      %38 = vector.broadcast %cst_29 : f32 to vector<8x128xf32>
      %39 = arith.mulf %35, %38 : vector<8x128xf32>
      %c0_30 = arith.constant 0 : index
      %c0_31 = arith.constant 0 : index
      %40 = vector.load %arg11[%c0_30, %c0_31] : memref<8x128xf32, #tpu.memory_space<vmem>>, vector<8x128xf32>
      %41 = vector.shape_cast %37 : vector<8x1xi1> to vector<8x1xi1>
      %42 = vector.broadcast %41 : vector<8x1xi1> to vector<8x128xi1>
      %43 = arith.select %42, %39, %40 : vector<8x128xi1>, vector<8x128xf32>
      %c0_32 = arith.constant 0 : index
      %c0_33 = arith.constant 0 : index
      %44 = vector.load %arg11[%c0_32, %c0_33] : memref<8x128xf32, #tpu.memory_space<vmem>>, vector<8x128xf32>
      tpu.vector_store %arg11[%c0_32, %c0_33], %43 {strides = array<i32>} : memref<8x128xf32, #tpu.memory_space<vmem>>, vector<8x128xf32>,
    } else {
    }
    return
  }
  func.func @transform_0(%arg0: i32, %arg1: memref<16xi32, #tpu.memory_space<smem>>, %arg2: memref<16xi32, #tpu.memory_space<smem>>, %arg3: memref<6xi32, #tpu.memory_space<smem>>) -> (i32, i32) {
    %c0_i32 = arith.constant 0 : i32
    %c0_i32_0 = arith.constant 0 : i32
    return %arg0, %c0_i32 : i32, i32
  }
  func.func @transform_1(%arg0: i32, %arg1: memref<16xi32, #tpu.memory_space<smem>>, %arg2: memref<16xi32, #tpu.memory_space<smem>>, %arg3: memref<6xi32, #tpu.memory_space<smem>>) -> (i32, i32) {
    %c0_i32 = arith.constant 0 : i32
    %c0_i32_0 = arith.constant 0 : i32
    %c0_i32_1 = arith.constant 0 : i32
    return %c0_i32, %c0_i32_0 : i32, i32
  }
  func.func @transform_2(%arg0: i32, %arg1: memref<16xi32, #tpu.memory_space<smem>>, %arg2: memref<16xi32, #tpu.memory_space<smem>>, %arg3: memref<6xi32, #tpu.memory_space<smem>>) -> (i32, i32) {
    %c0_i32 = arith.constant 0 : i32
    %c0_i32_0 = arith.constant 0 : i32
    %c0_i32_1 = arith.constant 0 : i32
    return %c0_i32, %c0_i32_0 : i32, i32
  }
  func.func @transform_3(%arg0: i32, %arg1: memref<16xi32, #tpu.memory_space<smem>>, %arg2: memref<16xi32, #tpu.memory_space<smem>>, %arg3: memref<6xi32, #tpu.memory_space<smem>>) -> (i32, i32) {
    %c0_i32 = arith.constant 0 : i32
    %c0_i32_0 = arith.constant 0 : i32
    %c0_i32_1 = arith.constant 0 : i32
    return %c0_i32, %c0_i32_0 : i32, i32
  }
  func.func @transform_7(%arg0: i32, %arg1: memref<16xi32, #tpu.memory_space<smem>>, %arg2: memref<16xi32, #tpu.memory_space<smem>>, %arg3: memref<6xi32, #tpu.memory_space<smem>>) -> (i32, i32) {
    %c0_i32 = arith.constant 0 : i32
    %c0_i32_0 = arith.constant 0 : i32
    return %arg0, %c0_i32 : i32, i32
  }
}

</mosaic_0001>

<llo_original>
// kernel: tpu_custom_call.1
$region0: #{tpu_custom_call.1}
  #allocation0 [shape = 'u32[]', space=smem, size = 0x4, offset = 0x4, fixed_abs, tag = 'smem constant byte address 0x4 - core index']
  #allocation1 [shape = 'u32[144,128]{1,0:T(1,128)}', space=vmem, size = 0x12000, scoped, tag = 'internal scratch']
  #allocation2 [shape = 'f32[8,128]{1,0:T(8,128)}', space=vmem, size = 0x1000, scoped, tag = 'scratch operand']
  #allocation3 [shape = 'f32[8,128]{1,0:T(8,128)}', space=vmem, size = 0x1000, scoped, tag = 'scratch operand']
  #allocation4 [shape = 'f32[8,128]{1,0:T(8,128)}', space=vmem, size = 0x1000, scoped, tag = 'scratch operand']
  #allocation5 [shape = 's32[3]{0}', space=sflag, size = 0xc, scoped, tag = 'scratch operand']
  #allocation6 [shape = 's32[1]{0}', space=sflag, size = 0x4, scoped, tag = 'scoped memory for tpu_custom_call.1']
  #allocation7 [shape = 'u8[512]{0}', space=smem, size = 0x200, scoped, tag = 'prefetched SMEM operand 0']
  #allocation8 [shape = 'u8[512]{0}', space=smem, size = 0x200, scoped, tag = 'prefetched SMEM operand 1']
  #allocation9 [shape = 'u8[512]{0}', space=smem, size = 0x200, scoped, tag = 'prefetched SMEM operand 2']
  #allocation17 [shape = 's32[]', space=sflag, size = 0x4, offset = 0, fixed_abs, tag = 'sflag constant byte address 0x0 - dummy sync flag']
  #allocation18 [shape = 's32[]', space=sflag, size = 0x4, offset = 0, fixed_abs, tag = 'sflag constant byte address 0x0 - dummy sync flag']
  #allocation19 [shape = 's32[]', space=sflag, size = 0x4, offset = 0, fixed_abs, tag = 'sflag constant byte address 0x0 - dummy sync flag']
  %s0 = inlined_call_operand.hbm [shape: s32[16], index: 0, kind: input, shape index: {}]
  %s1 = inlined_call_operand.hbm [shape: s32[16], index: 1, kind: input, shape index: {}]
  %s2 = inlined_call_operand.hbm [shape: s32[6], index: 2, kind: input, shape index: {}]
  %s3 = inlined_call_operand.vmem [shape: s32[16,1], index: 3, kind: input, shape index: {}]
  %s4 = inlined_call_operand.hbm [shape: bf16[128,128], index: 4, kind: input, shape index: {}]
  %s5 = inlined_call_operand.hbm [shape: bf16[128,128], index: 5, kind: input, shape index: {}]
  %s6 = inlined_call_operand.hbm [shape: bf16[128,128], index: 6, kind: input, shape index: {}]
  %s7 = inlined_call_operand.vmem [shape: f32[16,128], index: 7, kind: input, shape index: {}]
  %s8 = inlined_call_operand.vmem [shape: f32[8,128], index: 8, kind: input, shape index: {}]
  %s9 = inlined_call_operand.vmem [shape: f32[8,128], index: 9, kind: input, shape index: {}]
  %s10 = inlined_call_operand.hbm [shape: f32[16,128], index: 10, kind: output, shape index: {}]
  %s11 = sld [smem:[#allocation0]]
  $region203: #{tpu_custom_call.1} parent=0
    _
  %s13 = ssub.s32 1, %s11
  %s14 = scalar_select 0, %s13, %s11
  %16 = dma.hbm_to_smem %s0, 16, [#allocation7], [#allocation6]
  %18 = dma.hbm_to_smem %s1, 16, [#allocation8], [#allocation6]
  %20 = dma.hbm_to_smem %s2, 16, [#allocation9], [#allocation6]
  %21 = dma.done [#allocation6], 48
  %22 = sfence
  $region1: #{tpu_custom_call.1} parent=0
    #allocation10 [shape = 'u8[32768]{0}', space=vmem, size = 0x8000, scoped, tag = 'input window, operand 4, single buffered']
    #allocation11 [shape = 's32[2]{0}', space=sflag, size = 0x8, scoped, tag = 'scoped memory for tpu_custom_call.1']
    #allocation12 [shape = 's32[2]{0}', space=sflag, size = 0x8, scoped, tag = 'scoped memory for tpu_custom_call.1']
    #allocation13 [shape = 'u8[32768]{0}', space=vmem, size = 0x8000, scoped, tag = 'input window, operand 5, single buffered']
    #allocation14 [shape = 's32[1]{0}', space=sflag, size = 0x4, scoped, tag = 'scoped memory for tpu_custom_call.1']
    #allocation15 [shape = 'u8[32768]{0}', space=vmem, size = 0x8000, scoped, tag = 'input window, operand 6, single buffered']
    #allocation16 [shape = 'u8[8192]{0}', space=vmem, size = 0x2000, scoped, tag = 'output window, operand 0']
    %23 = vsyncpa [#allocation11], 0
    %24 = vsyncpa [#allocation14], 0
    %25 = vsyncpa [#allocation12], 0
    %s26 = scalar_lea.sflag [#allocation12], 1
    %27 = vsyncpa %s26, 0
    loop: start=0, step=1, limit=4
    $region2: #{tpu_custom_call.1} parent=1 // loop_pre_header
      _
    $region3: #{tpu_custom_call.1} parent=1 // loop_header
      %s29 = sphi 0, %s33
      %p30 = scmp.ge.s32.totalorder %s29, 4
      %s39 = sphi 0, %s41
      %s42 = sphi 0, %s39
      %s43 = sphi 0, %s42
      %s59 = sphi 0, %s43
      %s63 = sphi 0, %s63
      %s65 = sphi 0, %s63
      %s66 = sphi 0, %s65
      %s80 = sphi 0, %s66
      %s84 = sphi 0, %s84
      %s86 = sphi 0, %s84
      %s87 = sphi 0, %s86
      %s101 = sphi 0, %s87
      %s105 = sphi 0, %s105
      %s107 = sphi 0, %s105
      %s108 = sphi 0, %s107
      %s122 = sphi 0, %s108
      %s128 = sphi 0, %s130
      %s131 = sphi 0, %s128
      %s132 = sphi 0, %s131
      %s148 = sphi 0, %s132
    $region4: #{tpu_custom_call.1} parent=1 // loop_header_branch
      %32 = sbr.rel (%p30) target = $region8
    $region5: #{tpu_custom_call.1} parent=1 // loop_body
      %s34 = ssub.s32 %s29, 1
      %s35 = ssub.s32 %s29, 2
      %s36 = sadd.s32 %s29, 1
      %s37 = ssub.s32 %s29, %s36
      %p38 = scmp.eq.s32.totalorder %s37, 0
      %s40 = sadd.s32 %s39, 1
      %s41 = scalar_select %p38, %s39, %s40
      %p44 = pneg %p38
      %p45 = scmp.eq.s32.totalorder %s29, 1
      %p46 = por %p44, %p45
      %p47 = scmp.ne.s32.totalorder %s39, %s42
      %p48 = scmp.eq.s32.totalorder %s29, 0
      %p49 = por %p47, %p48
      %p50 = scmp.ne.s32.totalorder %s39, %s42
      %p51 = scmp.eq.s32.totalorder %s34, 1
      %p52 = por %p50, %p51
      %p53 = scmp.ne.s32.totalorder %s42, %s43
      %p54 = scmp.eq.s32.totalorder %s34, 0
      %p55 = por %p53, %p54
      %p56 = scmp.ne.s32.totalorder %s42, %s43
      %p57 = scmp.eq.s32.totalorder %s35, 1
      %p58 = por %p56, %p57
      %p60 = scmp.ne.s32.totalorder %s43, %s59
      %p61 = scmp.eq.s32.totalorder %s35, 0
      %p62 = por %p60, %p61
      %s64 = sadd.s32 %s63, 1
      %p67 = scmp.eq.s32.totalorder %s29, 1
      %p68 = scmp.ne.s32.totalorder %s63, %s65
      %p69 = scmp.eq.s32.totalorder %s29, 0
      %p70 = por %p68, %p69
      %p71 = scmp.ne.s32.totalorder %s63, %s65
      %p72 = scmp.eq.s32.totalorder %s34, 1
      %p73 = por %p71, %p72
      %p74 = scmp.ne.s32.totalorder %s65, %s66
      %p75 = scmp.eq.s32.totalorder %s34, 0
      %p76 = por %p74, %p75
      %p77 = scmp.ne.s32.totalorder %s65, %s66
      %p78 = scmp.eq.s32.totalorder %s35, 1
      %p79 = por %p77, %p78
      %p81 = scmp.ne.s32.totalorder %s66, %s80
      %p82 = scmp.eq.s32.totalorder %s35, 0
      %p83 = por %p81, %p82
      %s85 = sadd.s32 %s84, 1
      %p88 = scmp.eq.s32.totalorder %s29, 1
      %p89 = scmp.ne.s32.totalorder %s84, %s86
      %p90 = scmp.eq.s32.totalorder %s29, 0
      %p91 = por %p89, %p90
      %p92 = scmp.ne.s32.totalorder %s84, %s86
      %p93 = scmp.eq.s32.totalorder %s34, 1
      %p94 = por %p92, %p93
      %p95 = scmp.ne.s32.totalorder %s86, %s87
      %p96 = scmp.eq.s32.totalorder %s34, 0
      %p97 = por %p95, %p96
      %p98 = scmp.ne.s32.totalorder %s86, %s87
      %p99 = scmp.eq.s32.totalorder %s35, 1
      %p100 = por %p98, %p99
      %p102 = scmp.ne.s32.totalorder %s87, %s101
      %p103 = scmp.eq.s32.totalorder %s35, 0
      %p104 = por %p102, %p103
      %s106 = sadd.s32 %s105, 1
      %p109 = scmp.eq.s32.totalorder %s29, 1
      %p110 = scmp.ne.s32.totalorder %s105, %s107
      %p111 = scmp.eq.s32.totalorder %s29, 0
      %p112 = por %p110, %p111
      %p113 = scmp.ne.s32.totalorder %s105, %s107
      %p114 = scmp.eq.s32.totalorder %s34, 1
      %p115 = por %p113, %p114
      %p116 = scmp.ne.s32.totalorder %s107, %s108
      %p117 = scmp.eq.s32.totalorder %s34, 0
      %p118 = por %p116, %p117
      %p119 = scmp.ne.s32.totalorder %s107, %s108
      %p120 = scmp.eq.s32.totalorder %s35, 1
      %p121 = por %p119, %p120
      %p123 = scmp.ne.s32.totalorder %s108, %s122
      %p124 = scmp.eq.s32.totalorder %s35, 0
      %p125 = por %p123, %p124
      %s126 = ssub.s32 %s29, %s36
      %p127 = scmp.eq.s32.totalorder %s126, 0
      %s129 = sadd.s32 %s128, 1
      %s130 = scalar_select %p127, %s128, %s129
      %p133 = pneg %p127
      %p134 = scmp.eq.s32.totalorder %s29, 1
      %p135 = por %p133, %p134
      %p136 = scmp.ne.s32.totalorder %s128, %s131
      %p137 = scmp.eq.s32.totalorder %s29, 0
      %p138 = por %p136, %p137
      %p139 = scmp.ne.s32.totalorder %s128, %s131
      %p140 = scmp.eq.s32.totalorder %s34, 1
      %p141 = por %p139, %p140
      %p142 = scmp.ne.s32.totalorder %s131, %s132
      %p143 = scmp.eq.s32.totalorder %s34, 0
      %p144 = por %p142, %p143
      %p145 = scmp.ne.s32.totalorder %s131, %s132
      %p146 = scmp.eq.s32.totalorder %s35, 1
      %p147 = por %p145, %p146
      %p149 = scmp.ne.s32.totalorder %s132, %s148
      %p150 = scmp.eq.s32.totalorder %s35, 0
      %p151 = por %p149, %p150
      %p152 = scmp.le.s32.totalorder 1, %s29
      %p153 = scmp.lt.s32.totalorder %s29, 3
      %p154 = pnand %p152, %p153
      %p155 = pneg %p154
      // Predicated region
      $region9: #{tpu_custom_call.1} parent=5 // pred_check
        _
      $region10: #{tpu_custom_call.1} parent=5 // pred_check_branch
        %157 = sbr.rel (%p154) target = $region12
      $region11: #{tpu_custom_call.1} parent=5 // pred_region
        %s158 = ssub.s32 %s29, 1
        // Predicated region
        $region13: #{tpu_custom_call.1} parent=11 // pred_check
          %p159 = pneg %p76
        $region14: #{tpu_custom_call.1} parent=11 // pred_check_branch
          %161 = sbr.rel (%p159) target = $region16
        $region15: #{tpu_custom_call.1} parent=11 // pred_region
          %s163 = ssub.s32 1024, 1024
          %164 = vsyncadd [#allocation11], %s163
          %s165 = sshll.u32 [#allocation10], 4
          %s166 = int_to_ptr.vmem [resolvable:$true] %s165
          %171 = dma.hbm_to_vmem [thread:$0]  %s4, 1024, %s166, [#allocation11], 64, 64, 4
        $region16: #{tpu_custom_call.1} parent=11 // pred_fallthru
          _
        // Predicated region
        $region17: #{tpu_custom_call.1} parent=11 // pred_check
          %p172 = pneg %p97
        $region18: #{tpu_custom_call.1} parent=11 // pred_check_branch
          %174 = sbr.rel (%p172) target = $region20
        $region19: #{tpu_custom_call.1} parent=11 // pred_region
          %s176 = ssub.s32 1024, 1024
          %177 = vsyncadd [#allocation14], %s176
          %s178 = sshll.u32 [#allocation13], 4
          %s179 = int_to_ptr.vmem [resolvable:$true] %s178
          %184 = dma.hbm_to_vmem [thread:$0]  %s5, 1024, %s179, [#allocation14], 64, 64, 4
        $region20: #{tpu_custom_call.1} parent=11 // pred_fallthru
          _
        // Predicated region
        $region21: #{tpu_custom_call.1} parent=11 // pred_check
          %p185 = pneg %p118
        $region22: #{tpu_custom_call.1} parent=11 // pred_check_branch
          %187 = sbr.rel (%p185) target = $region24
        $region23: #{tpu_custom_call.1} parent=11 // pred_region
          %s189 = ssub.s32 1024, 1024
          %190 = vsyncadd [#allocation14], %s189
          %s191 = sshll.u32 [#allocation15], 4
          %s192 = int_to_ptr.vmem [resolvable:$true] %s191
          %197 = dma.hbm_to_vmem [thread:$0]  %s6, 1024, %s192, [#allocation14], 64, 64, 4
        $region24: #{tpu_custom_call.1} parent=11 // pred_fallthru
          _
      $region12: #{tpu_custom_call.1} parent=5 // pred_fallthru
        _
      %p198 = scmp.lt.s32.totalorder %s29, 2
      // Predicated region
      $region25: #{tpu_custom_call.1} parent=5 // pred_check
        %p199 = pneg %p198
      $region26: #{tpu_custom_call.1} parent=5 // pred_check_branch
        %201 = sbr.rel (%p199) target = $region28
      $region27: #{tpu_custom_call.1} parent=5 // pred_region
        // Predicated region
        $region29: #{tpu_custom_call.1} parent=27 // pred_check
          %p202 = pneg %p49
        $region30: #{tpu_custom_call.1} parent=27 // pred_check_branch
          %204 = sbr.rel (%p202) target = $region32
        $region31: #{tpu_custom_call.1} parent=27 // pred_region
          %p205 = scmp.lt.s32.totalorder %s29, 1
          %s206 = scalar_select %p205, %s29, 1
          %s207 = smul.addr %s206, 8
          %s208 = scalar_lea.vmem %s3, %s207
        $region32: #{tpu_custom_call.1} parent=27 // pred_fallthru
          _
      $region28: #{tpu_custom_call.1} parent=5 // pred_fallthru
        _
      %p209 = scmp.le.s32.totalorder 1, %s29
      %p210 = scmp.lt.s32.totalorder %s29, 3
      %p211 = pnand %p209, %p210
      %p212 = pneg %p211
      // Predicated region
      $region33: #{tpu_custom_call.1} parent=5 // pred_check
        _
      $region34: #{tpu_custom_call.1} parent=5 // pred_check_branch
        %214 = sbr.rel (%p211) target = $region36
      $region35: #{tpu_custom_call.1} parent=5 // pred_region
        %s215 = ssub.s32 %s29, 1
        // Predicated region
        $region37: #{tpu_custom_call.1} parent=35 // pred_check
          %p216 = pneg %p76
        $region38: #{tpu_custom_call.1} parent=35 // pred_check_branch
          %218 = sbr.rel (%p216) target = $region40
        $region39: #{tpu_custom_call.1} parent=35 // pred_region
          %219 = dma.done [#allocation11], 1024
        $region40: #{tpu_custom_call.1} parent=35 // pred_fallthru
          _
        // Predicated region
        $region41: #{tpu_custom_call.1} parent=35 // pred_check
          %p220 = pneg %p97
        $region42: #{tpu_custom_call.1} parent=35 // pred_check_branch
          %222 = sbr.rel (%p220) target = $region44
        $region43: #{tpu_custom_call.1} parent=35 // pred_region
          %223 = dma.done [#allocation14], 1024
        $region44: #{tpu_custom_call.1} parent=35 // pred_fallthru
          _
        // Predicated region
        $region45: #{tpu_custom_call.1} parent=35 // pred_check
          %p224 = pneg %p118
        $region46: #{tpu_custom_call.1} parent=35 // pred_check_branch
          %226 = sbr.rel (%p224) target = $region48
        $region47: #{tpu_custom_call.1} parent=35 // pred_region
          %227 = dma.done [#allocation14], 1024
        $region48: #{tpu_custom_call.1} parent=35 // pred_fallthru
          _
        %p228 = scmp.lt.s32.totalorder %s34, 1
        %s229 = scalar_select %p228, %s34, 1
        %s230 = smul.addr %s229, 8
        %s231 = scalar_lea.vmem %s3, %s230
        %p232 = pneg %p55
        %p233 = pneg %p52
        %p234 = pneg %p76
        %p235 = pneg %p73
        %p236 = pneg %p97
        %p237 = pneg %p94
        %p238 = pneg %p118
        %p239 = pneg %p115
        %p240 = pneg %p144
        %p241 = pneg %p141
        %s242 = sand.u32 %s131, 1
        %s243 = scalar_lea.sflag [#allocation12], %s242
        %s244 = sand.u32 %s131, 1
        %s245 = smul.addr %s244, 8
        %s246 = scalar_lea.vmem [#allocation16], %s245
        %p247 = scmp.lt.s32.totalorder %s34, 1
        %s248 = scalar_select %p247, %s34, 1
        %s249 = smul.addr %s248, 8
        %s250 = scalar_lea.vmem %s3, %s249
        %s252 = smul.u32 %s34, 8
        loop: start=0, step=1, limit=8
        $region49: #{tpu_custom_call.1} parent=35 // loop_pre_header
          _
        $region50: #{tpu_custom_call.1} parent=35 // loop_header
          %s254 = sphi 0, %s258
          %p255 = scmp.ge.s32.totalorder %s254, 8
        $region51: #{tpu_custom_call.1} parent=35 // loop_header_branch
          %257 = sbr.rel (%p255) target = $region55
        $region52: #{tpu_custom_call.1} parent=35 // loop_body
          %s259 = sadd.s32 %s252, %s254
          %s260 = sld [smem:[#allocation8 + %s259]]
          %s261 = sld [smem:[#allocation7 + %s259]]
          %p262 = scmp.eq.s32.totalorder %s260, 0
          // Predicated region
          $region56: #{tpu_custom_call.1} parent=52 // pred_check
            %p263 = pneg %p262
          $region57: #{tpu_custom_call.1} parent=52 // pred_check_branch
            %265 = sbr.rel (%p263) target = $region59
          $region58: #{tpu_custom_call.1} parent=52 // pred_region
            %s266 = scalar_lea.vmem %s7, %s261
            %s267 = scalar_lea.vmem [#allocation2], %s254
            %p269 = scmp.lt.u32.totalorder 1, 8
            %p270 = pneg %p269
            // Predicated region
            $region60: #{tpu_custom_call.1} parent=58 // pred_check
              _
            $region61: #{tpu_custom_call.1} parent=58 // pred_check_branch
              %272 = sbr.rel (%p269) target = $region63
            $region62: #{tpu_custom_call.1} parent=58 // pred_region
              %s287 = sand.u32 1, 7
              %p288 = scmp.eq.s32.totalorder %s287, 0
              %p289 = pneg %p288
              // Predicated region
              $region75: #{tpu_custom_call.1} parent=62 // pred_check
                _
              $region76: #{tpu_custom_call.1} parent=62 // pred_check_branch
                %291 = sbr.rel (%p288) target = $region78
              $region77: #{tpu_custom_call.1} parent=62 // pred_region
                %s292 = sand.u32 1, 7
                %s293 = ssub.s32 1, %s292
                %s294 = scalar_lea.vmem %s266, %s293
                %s295 = ssub.s32 1, %s292
                %s296 = scalar_lea.vmem %s267, %s295 [#allocation2]
                %s297 = sshllo.u32 0, %s292
                loop: start=0, step=1, limit=1
                $region79: #{tpu_custom_call.1} parent=77 // loop_pre_header
                  _
                $region80: #{tpu_custom_call.1} parent=77 // loop_header
                  %s299 = sphi 0, %s303
                  %p300 = scmp.ge.s32.totalorder %s299, 1
                  %s304 = sphi %s294, %s294
                  %s305 = sphi %s296, %s296
                $region81: #{tpu_custom_call.1} parent=77 // loop_header_branch
                  %302 = sbr.rel (%p300) target = $region85
                $region82: #{tpu_custom_call.1} parent=77 // loop_body
                  %v306 = vld [vmem:[%s304] sm:%s297]
                  %307 = vst [vmem:[%s305] sm:%s297] %v306
                $region83: #{tpu_custom_call.1} parent=77 // loop_footer
                  %s303 = sadd.s32 1, %s299
                $region84: #{tpu_custom_call.1} parent=77 // loop_footer_branch
                  %298 = sbr.rel target = $region80
                $region85: #{tpu_custom_call.1} parent=77 // loop_exit
                  _
              $region78: #{tpu_custom_call.1} parent=62 // pred_fallthru
                _
            $region63: #{tpu_custom_call.1} parent=58 // pred_fallthru
              _
            // Predicated region
            $region64: #{tpu_custom_call.1} parent=58 // pred_check
              %p273 = pneg %p269
            $region65: #{tpu_custom_call.1} parent=58 // pred_check_branch
              %275 = sbr.rel (%p273) target = $region67
            $region66: #{tpu_custom_call.1} parent=58 // pred_region
              %s276 = sshllo.u32 0, 1
              loop: start=0, step=1, limit=1
              $region68: #{tpu_custom_call.1} parent=66 // loop_pre_header
                _
              $region69: #{tpu_custom_call.1} parent=66 // loop_header
                %s278 = sphi 0, %s282
                %p279 = scmp.ge.s32.totalorder %s278, 1
                %s283 = sphi %s266, %s266
                %s284 = sphi %s267, %s267
              $region70: #{tpu_custom_call.1} parent=66 // loop_header_branch
                %281 = sbr.rel (%p279) target = $region74
              $region71: #{tpu_custom_call.1} parent=66 // loop_body
                %v285 = vld [vmem:[%s283] sm:%s276]
                %286 = vst [vmem:[%s284] sm:%s276] %v285
              $region72: #{tpu_custom_call.1} parent=66 // loop_footer
                %s282 = sadd.s32 1, %s278
              $region73: #{tpu_custom_call.1} parent=66 // loop_footer_branch
                %277 = sbr.rel target = $region69
              $region74: #{tpu_custom_call.1} parent=66 // loop_exit
                _
            $region67: #{tpu_custom_call.1} parent=58 // pred_fallthru
              _
            // Predicated region
            $region86: #{tpu_custom_call.1} parent=58 // pred_check
              _
            $region87: #{tpu_custom_call.1} parent=58 // pred_check_branch
              %310 = sbr.rel (0) target = $region89
            $region88: #{tpu_custom_call.1} parent=58 // pred_region
              %311 = vsyncadd [#allocation5], 16
            $region89: #{tpu_custom_call.1} parent=58 // pred_fallthru
              _
          $region59: #{tpu_custom_call.1} parent=52 // pred_fallthru
            _
          %p312 = scmp.eq.s32.totalorder %s260, 1
          // Predicated region
          $region90: #{tpu_custom_call.1} parent=52 // pred_check
            %p313 = pneg %p312
          $region91: #{tpu_custom_call.1} parent=52 // pred_check_branch
            %315 = sbr.rel (%p313) target = $region93
          $region92: #{tpu_custom_call.1} parent=52 // pred_region
            %s316 = scalar_lea.vmem %s8, %s261
            %s317 = scalar_lea.vmem [#allocation3], %s254
            %s318 = scalar_lea.sflag [#allocation5], 1
            %p320 = scmp.lt.u32.totalorder 1, 8
            %p321 = pneg %p320
            // Predicated region
            $region94: #{tpu_custom_call.1} parent=92 // pred_check
              _
            $region95: #{tpu_custom_call.1} parent=92 // pred_check_branch
              %323 = sbr.rel (%p320) target = $region97
            $region96: #{tpu_custom_call.1} parent=92 // pred_region
              %s338 = sand.u32 1, 7
              %p339 = scmp.eq.s32.totalorder %s338, 0
              %p340 = pneg %p339
              // Predicated region
              $region109: #{tpu_custom_call.1} parent=96 // pred_check
                _
              $region110: #{tpu_custom_call.1} parent=96 // pred_check_branch
                %342 = sbr.rel (%p339) target = $region112
              $region111: #{tpu_custom_call.1} parent=96 // pred_region
                %s343 = sand.u32 1, 7
                %s344 = ssub.s32 1, %s343
                %s345 = scalar_lea.vmem %s316, %s344
                %s346 = ssub.s32 1, %s343
                %s347 = scalar_lea.vmem %s317, %s346 [#allocation3]
                %s348 = sshllo.u32 0, %s343
                loop: start=0, step=1, limit=1
                $region113: #{tpu_custom_call.1} parent=111 // loop_pre_header
                  _
                $region114: #{tpu_custom_call.1} parent=111 // loop_header
                  %s350 = sphi 0, %s354
                  %p351 = scmp.ge.s32.totalorder %s350, 1
                  %s355 = sphi %s345, %s345
                  %s356 = sphi %s347, %s347
                $region115: #{tpu_custom_call.1} parent=111 // loop_header_branch
                  %353 = sbr.rel (%p351) target = $region119
                $region116: #{tpu_custom_call.1} parent=111 // loop_body
                  %v357 = vld [vmem:[%s355] sm:%s348]
                  %358 = vst [vmem:[%s356] sm:%s348] %v357
                $region117: #{tpu_custom_call.1} parent=111 // loop_footer
                  %s354 = sadd.s32 1, %s350
                $region118: #{tpu_custom_call.1} parent=111 // loop_footer_branch
                  %349 = sbr.rel target = $region114
                $region119: #{tpu_custom_call.1} parent=111 // loop_exit
                  _
              $region112: #{tpu_custom_call.1} parent=96 // pred_fallthru
                _
            $region97: #{tpu_custom_call.1} parent=92 // pred_fallthru
              _
            // Predicated region
            $region98: #{tpu_custom_call.1} parent=92 // pred_check
              %p324 = pneg %p320
            $region99: #{tpu_custom_call.1} parent=92 // pred_check_branch
              %326 = sbr.rel (%p324) target = $region101
            $region100: #{tpu_custom_call.1} parent=92 // pred_region
              %s327 = sshllo.u32 0, 1
              loop: start=0, step=1, limit=1
              $region102: #{tpu_custom_call.1} parent=100 // loop_pre_header
                _
              $region103: #{tpu_custom_call.1} parent=100 // loop_header
                %s329 = sphi 0, %s333
                %p330 = scmp.ge.s32.totalorder %s329, 1
                %s334 = sphi %s316, %s316
                %s335 = sphi %s317, %s317
              $region104: #{tpu_custom_call.1} parent=100 // loop_header_branch
                %332 = sbr.rel (%p330) target = $region108
              $region105: #{tpu_custom_call.1} parent=100 // loop_body
                %v336 = vld [vmem:[%s334] sm:%s327]
                %337 = vst [vmem:[%s335] sm:%s327] %v336
              $region106: #{tpu_custom_call.1} parent=100 // loop_footer
                %s333 = sadd.s32 1, %s329
              $region107: #{tpu_custom_call.1} parent=100 // loop_footer_branch
                %328 = sbr.rel target = $region103
              $region108: #{tpu_custom_call.1} parent=100 // loop_exit
                _
            $region101: #{tpu_custom_call.1} parent=92 // pred_fallthru
              _
            // Predicated region
            $region120: #{tpu_custom_call.1} parent=92 // pred_check
              _
            $region121: #{tpu_custom_call.1} parent=92 // pred_check_branch
              %361 = sbr.rel (0) target = $region123
            $region122: #{tpu_custom_call.1} parent=92 // pred_region
              %362 = vsyncadd %s318, 16
            $region123: #{tpu_custom_call.1} parent=92 // pred_fallthru
              _
          $region93: #{tpu_custom_call.1} parent=52 // pred_fallthru
            _
          %p363 = scmp.eq.s32.totalorder %s260, 2
          // Predicated region
          $region124: #{tpu_custom_call.1} parent=52 // pred_check
            %p364 = pneg %p363
          $region125: #{tpu_custom_call.1} parent=52 // pred_check_branch
            %366 = sbr.rel (%p364) target = $region127
          $region126: #{tpu_custom_call.1} parent=52 // pred_region
            %s367 = scalar_lea.vmem %s9, %s261
            %s368 = scalar_lea.vmem [#allocation4], %s254
            %s369 = scalar_lea.sflag [#allocation5], 2
            %p371 = scmp.lt.u32.totalorder 1, 8
            %p372 = pneg %p371
            // Predicated region
            $region128: #{tpu_custom_call.1} parent=126 // pred_check
              _
            $region129: #{tpu_custom_call.1} parent=126 // pred_check_branch
              %374 = sbr.rel (%p371) target = $region131
            $region130: #{tpu_custom_call.1} parent=126 // pred_region
              %s389 = sand.u32 1, 7
              %p390 = scmp.eq.s32.totalorder %s389, 0
              %p391 = pneg %p390
              // Predicated region
              $region143: #{tpu_custom_call.1} parent=130 // pred_check
                _
              $region144: #{tpu_custom_call.1} parent=130 // pred_check_branch
                %393 = sbr.rel (%p390) target = $region146
              $region145: #{tpu_custom_call.1} parent=130 // pred_region
                %s394 = sand.u32 1, 7
                %s395 = ssub.s32 1, %s394
                %s396 = scalar_lea.vmem %s367, %s395
                %s397 = ssub.s32 1, %s394
                %s398 = scalar_lea.vmem %s368, %s397 [#allocation4]
                %s399 = sshllo.u32 0, %s394
                loop: start=0, step=1, limit=1
                $region147: #{tpu_custom_call.1} parent=145 // loop_pre_header
                  _
                $region148: #{tpu_custom_call.1} parent=145 // loop_header
                  %s401 = sphi 0, %s405
                  %p402 = scmp.ge.s32.totalorder %s401, 1
                  %s406 = sphi %s396, %s396
                  %s407 = sphi %s398, %s398
                $region149: #{tpu_custom_call.1} parent=145 // loop_header_branch
                  %404 = sbr.rel (%p402) target = $region153
                $region150: #{tpu_custom_call.1} parent=145 // loop_body
                  %v408 = vld [vmem:[%s406] sm:%s399]
                  %409 = vst [vmem:[%s407] sm:%s399] %v408
                $region151: #{tpu_custom_call.1} parent=145 // loop_footer
                  %s405 = sadd.s32 1, %s401
                $region152: #{tpu_custom_call.1} parent=145 // loop_footer_branch
                  %400 = sbr.rel target = $region148
                $region153: #{tpu_custom_call.1} parent=145 // loop_exit
                  _
              $region146: #{tpu_custom_call.1} parent=130 // pred_fallthru
                _
            $region131: #{tpu_custom_call.1} parent=126 // pred_fallthru
              _
            // Predicated region
            $region132: #{tpu_custom_call.1} parent=126 // pred_check
              %p375 = pneg %p371
            $region133: #{tpu_custom_call.1} parent=126 // pred_check_branch
              %377 = sbr.rel (%p375) target = $region135
            $region134: #{tpu_custom_call.1} parent=126 // pred_region
              %s378 = sshllo.u32 0, 1
              loop: start=0, step=1, limit=1
              $region136: #{tpu_custom_call.1} parent=134 // loop_pre_header
                _
              $region137: #{tpu_custom_call.1} parent=134 // loop_header
                %s380 = sphi 0, %s384
                %p381 = scmp.ge.s32.totalorder %s380, 1
                %s385 = sphi %s367, %s367
                %s386 = sphi %s368, %s368
              $region138: #{tpu_custom_call.1} parent=134 // loop_header_branch
                %383 = sbr.rel (%p381) target = $region142
              $region139: #{tpu_custom_call.1} parent=134 // loop_body
                %v387 = vld [vmem:[%s385] sm:%s378]
                %388 = vst [vmem:[%s386] sm:%s378] %v387
              $region140: #{tpu_custom_call.1} parent=134 // loop_footer
                %s384 = sadd.s32 1, %s380
              $region141: #{tpu_custom_call.1} parent=134 // loop_footer_branch
                %379 = sbr.rel target = $region137
              $region142: #{tpu_custom_call.1} parent=134 // loop_exit
                _
            $region135: #{tpu_custom_call.1} parent=126 // pred_fallthru
              _
            // Predicated region
            $region154: #{tpu_custom_call.1} parent=126 // pred_check
              _
            $region155: #{tpu_custom_call.1} parent=126 // pred_check_branch
              %412 = sbr.rel (0) target = $region157
            $region156: #{tpu_custom_call.1} parent=126 // pred_region
              %413 = vsyncadd %s369, 16
            $region157: #{tpu_custom_call.1} parent=126 // pred_fallthru
              _
          $region127: #{tpu_custom_call.1} parent=52 // pred_fallthru
            _
        $region53: #{tpu_custom_call.1} parent=35 // loop_footer
          %s258 = sadd.s32 1, %s254
        $region54: #{tpu_custom_call.1} parent=35 // loop_footer_branch
          %253 = sbr.rel target = $region50
        $region55: #{tpu_custom_call.1} parent=35 // loop_exit
          _
        %414 = vst [vmem:[%s246] sm:$0xff] 0.0
        %v415 = vld [vmem:[%s250] sm:$0xff]
        %s416 = smul.u32 %s34, 3
        %s417 = sld [smem:[#allocation9 + %s416]]
        %p418 = scmp.gt.s32.totalorder %s417, 0
        // Predicated region
        $region158: #{tpu_custom_call.1} parent=35 // pred_check
          %p419 = pneg %p418
        $region159: #{tpu_custom_call.1} parent=35 // pred_check_branch
          %421 = sbr.rel (%p419) target = $region161
        $region160: #{tpu_custom_call.1} parent=35 // pred_region
          // While loop
          $region162: #{tpu_custom_call.1} parent=160 // loop_pre_header
            _
          $region163: #{tpu_custom_call.1} parent=160 // loop_header
            %s423 = sphi 0, %s425
            %p424 = scmp.ge.s32.totalorder %s423, %s417
          $region164: #{tpu_custom_call.1} parent=160 // loop_header_branch
            %427 = sbr.rel (%p424) target = $region168
          $region165: #{tpu_custom_call.1} parent=160 // loop_body
            %s428 = smul.u32 1, 1
            %s429 = sshll.u32 %s428, 4
            %430 = dma.done [#allocation5], %s429
          $region166: #{tpu_custom_call.1} parent=160 // loop_footer
            %s425 = sadd.s32 %s423, 1
          $region167: #{tpu_custom_call.1} parent=160 // loop_footer_branch
            %422 = sbr.rel target = $region163
          $region168: #{tpu_custom_call.1} parent=160 // loop_exit
            _
          %v431 = vld [vmem:[#allocation2] sm:$0xff]
          %v432 = vpack.c.bf16 %v431, %v431
          %v433 = vld [vmem:[#allocation10] sm:$0xf]
          %v434 = vld [vmem:[#allocation10 + $0x4] sm:$0xf]
          %v435 = vld [vmem:[#allocation10 + $0x8] sm:$0xf]
          %v436 = vld [vmem:[#allocation10 + $0xc] sm:$0xf]
          %v437 = vld [vmem:[#allocation10 + $0x10] sm:$0xf]
          %v438 = vld [vmem:[#allocation10 + $0x14] sm:$0xf]
          %v439 = vld [vmem:[#allocation10 + $0x18] sm:$0xf]
          %v440 = vld [vmem:[#allocation10 + $0x1c] sm:$0xf]
          %v441 = vld [vmem:[#allocation10 + $0x20] sm:$0xf]
          %v442 = vld [vmem:[#allocation10 + $0x24] sm:$0xf]
          %v443 = vld [vmem:[#allocation10 + $0x28] sm:$0xf]
          %v444 = vld [vmem:[#allocation10 + $0x2c] sm:$0xf]
          %v445 = vld [vmem:[#allocation10 + $0x30] sm:$0xf]
          %v446 = vld [vmem:[#allocation10 + $0x34] sm:$0xf]
          %v447 = vld [vmem:[#allocation10 + $0x38] sm:$0xf]
          %v448 = vld [vmem:[#allocation10 + $0x3c] sm:$0xf]
          %v465 = vunpack.c.l.b16 %v433
          %v466 = vunpack.c.l.b16 %v434
          %v467 = vunpack.c.l.b16 %v435
          %v468 = vunpack.c.l.b16 %v436
          %v469 = vunpack.c.l.b16 %v437
          %v470 = vunpack.c.l.b16 %v438
          %v471 = vunpack.c.l.b16 %v439
          %v472 = vunpack.c.l.b16 %v440
          %v473 = vunpack.c.l.b16 %v441
          %v474 = vunpack.c.l.b16 %v442
          %v475 = vunpack.c.l.b16 %v443
          %v476 = vunpack.c.l.b16 %v444
          %v477 = vunpack.c.l.b16 %v445
          %v478 = vunpack.c.l.b16 %v446
          %v479 = vunpack.c.l.b16 %v447
          %v480 = vunpack.c.l.b16 %v448
          %v481 = vpack.c.b16 %v466, %v465
          %v482 = vpack.c.b16 %v468, %v467
          %v483 = vpack.c.b16 %v470, %v469
          %v484 = vpack.c.b16 %v472, %v471
          %v485 = vpack.c.b16 %v474, %v473
          %v486 = vpack.c.b16 %v476, %v475
          %v487 = vpack.c.b16 %v478, %v477
          %v488 = vpack.c.b16 %v480, %v479
          %497 = vmatprep.subr.bf16.mxu0 0
          %498 = vmatpush1.bf16.msra.mxu0 %v481
          %499 = vmatprep.subr.bf16.mxu0 0
          %500 = vmatpush1.bf16.msra.mxu0 %v482
          %501 = vmatprep.subr.bf16.mxu0 0
          %502 = vmatpush1.bf16.msra.mxu0 %v483
          %503 = vmatprep.subr.bf16.mxu0 0
          %504 = vmatpush1.bf16.msra.mxu0 %v484
          %505 = vmatprep.subr.bf16.mxu0 0
          %506 = vmatpush1.bf16.msra.mxu0 %v485
          %507 = vmatprep.subr.bf16.mxu0 0
          %508 = vmatpush1.bf16.msra.mxu0 %v486
          %509 = vmatprep.subr.bf16.mxu0 0
          %510 = vmatpush1.bf16.msra.mxu0 %v487
          %511 = vmatprep.subr.bf16.mxu0 0
          %512 = vmatpush1.bf16.msra.mxu0 %v488
          %513 = vmatprep.subr.bf16.mxu0 0
          %514 = vmatpush1.bf16.msra.mxu0 0
          %515 = vmatprep.subr.bf16.mxu0 0
          %516 = vmatpush1.bf16.msra.mxu0 0
          %517 = vmatprep.subr.bf16.mxu0 0
          %518 = vmatpush1.bf16.msra.mxu0 0
          %519 = vmatprep.subr.bf16.mxu0 0
          %520 = vmatpush1.bf16.msra.mxu0 0
          %521 = vmatprep.subr.bf16.mxu0 0
          %522 = vmatpush1.bf16.msra.mxu0 0
          %523 = vmatprep.subr.bf16.mxu0 0
          %524 = vmatpush1.bf16.msra.mxu0 0
          %525 = vmatprep.subr.bf16.mxu0 0
          %526 = vmatpush1.bf16.msra.mxu0 0
          %527 = vmatprep.subr.bf16.mxu0 0
          %528 = vmatpush1.bf16.msra.mxu0 0
          %529 = vmatprep.mubr.bf16.mxu0 0
          %530 = vmatmul.mubr.bf16.gmra.mrb[0].mxu0 %v432
          %v531 = vpop.f32.mrb[0].mxu0
          %v532 = vadd.f32 0.0, %v531
          %v533 = vpop.f32.mrb[0].mxu0
          %v534 = vpop.f32.mrb[0].mxu0
          %v535 = vpop.f32.mrb[0].mxu0
          %536 = vdwg.mxu0
          %vm537 = vcmp.eq.s32.totalorder %v415, 0
          %v538 = vmul.f32 %v532, 5.656854
          %v539 = vld [vmem:[%s246] sm:$0xff]
          %v540 = vsel %vm537, 1, 0
          %541 = vset.pattern.permute.xlu0 0
          %542 = vperm.xlu0 %541, %v540
          %v543 = vpop.permute.xlu0 %542
          %vm544 = vcmp.eq.s32.totalorder %v543, 1
          %v545 = vsel %vm544, %v538, %v539
          %546 = vst [vmem:[%s246] sm:$0xff] %v545
        $region161: #{tpu_custom_call.1} parent=35 // pred_fallthru
          _
        %s547 = sadd.s32 %s416, 1
        %s548 = sld [smem:[#allocation9 + %s547]]
        %p549 = scmp.gt.s32.totalorder %s548, 0
        // Predicated region
        $region169: #{tpu_custom_call.1} parent=35 // pred_check
          %p550 = pneg %p549
        $region170: #{tpu_custom_call.1} parent=35 // pred_check_branch
          %552 = sbr.rel (%p550) target = $region172
        $region171: #{tpu_custom_call.1} parent=35 // pred_region
          // While loop
          $region173: #{tpu_custom_call.1} parent=171 // loop_pre_header
            _
          $region174: #{tpu_custom_call.1} parent=171 // loop_header
            %s554 = sphi 0, %s556
            %p555 = scmp.ge.s32.totalorder %s554, %s548
          $region175: #{tpu_custom_call.1} parent=171 // loop_header_branch
            %558 = sbr.rel (%p555) target = $region179
          $region176: #{tpu_custom_call.1} parent=171 // loop_body
            %s559 = scalar_lea.sflag [#allocation5], 1
            %s560 = smul.u32 1, 1
            %s561 = sshll.u32 %s560, 4
            %562 = dma.done %s559, %s561
          $region177: #{tpu_custom_call.1} parent=171 // loop_footer
            %s556 = sadd.s32 %s554, 1
          $region178: #{tpu_custom_call.1} parent=171 // loop_footer_branch
            %553 = sbr.rel target = $region174
          $region179: #{tpu_custom_call.1} parent=171 // loop_exit
            _
          %v563 = vld [vmem:[#allocation3] sm:$0xff]
          %v564 = vpack.c.bf16 %v563, %v563
          %v565 = vld [vmem:[#allocation13] sm:$0xf]
          %v566 = vld [vmem:[#allocation13 + $0x4] sm:$0xf]
          %v567 = vld [vmem:[#allocation13 + $0x8] sm:$0xf]
          %v568 = vld [vmem:[#allocation13 + $0xc] sm:$0xf]
          %v569 = vld [vmem:[#allocation13 + $0x10] sm:$0xf]
          %v570 = vld [vmem:[#allocation13 + $0x14] sm:$0xf]
          %v571 = vld [vmem:[#allocation13 + $0x18] sm:$0xf]
          %v572 = vld [vmem:[#allocation13 + $0x1c] sm:$0xf]
          %v573 = vld [vmem:[#allocation13 + $0x20] sm:$0xf]
          %v574 = vld [vmem:[#allocation13 + $0x24] sm:$0xf]
          %v575 = vld [vmem:[#allocation13 + $0x28] sm:$0xf]
          %v576 = vld [vmem:[#allocation13 + $0x2c] sm:$0xf]
          %v577 = vld [vmem:[#allocation13 + $0x30] sm:$0xf]
          %v578 = vld [vmem:[#allocation13 + $0x34] sm:$0xf]
          %v579 = vld [vmem:[#allocation13 + $0x38] sm:$0xf]
          %v580 = vld [vmem:[#allocation13 + $0x3c] sm:$0xf]
          %v597 = vunpack.c.l.b16 %v565
          %v598 = vunpack.c.l.b16 %v566
          %v599 = vunpack.c.l.b16 %v567
          %v600 = vunpack.c.l.b16 %v568
          %v601 = vunpack.c.l.b16 %v569
          %v602 = vunpack.c.l.b16 %v570
          %v603 = vunpack.c.l.b16 %v571
          %v604 = vunpack.c.l.b16 %v572
          %v605 = vunpack.c.l.b16 %v573
          %v606 = vunpack.c.l.b16 %v574
          %v607 = vunpack.c.l.b16 %v575
          %v608 = vunpack.c.l.b16 %v576
          %v609 = vunpack.c.l.b16 %v577
          %v610 = vunpack.c.l.b16 %v578
          %v611 = vunpack.c.l.b16 %v579
          %v612 = vunpack.c.l.b16 %v580
          %v613 = vpack.c.b16 %v598, %v597
          %v614 = vpack.c.b16 %v600, %v599
          %v615 = vpack.c.b16 %v602, %v601
          %v616 = vpack.c.b16 %v604, %v603
          %v617 = vpack.c.b16 %v606, %v605
          %v618 = vpack.c.b16 %v608, %v607
          %v619 = vpack.c.b16 %v610, %v609
          %v620 = vpack.c.b16 %v612, %v611
          %629 = vmatprep.subr.bf16.mxu0 0
          %630 = vmatpush1.bf16.msra.mxu0 %v613
          %631 = vmatprep.subr.bf16.mxu0 0
          %632 = vmatpush1.bf16.msra.mxu0 %v614
          %633 = vmatprep.subr.bf16.mxu0 0
          %634 = vmatpush1.bf16.msra.mxu0 %v615
          %635 = vmatprep.subr.bf16.mxu0 0
          %636 = vmatpush1.bf16.msra.mxu0 %v616
          %637 = vmatprep.subr.bf16.mxu0 0
          %638 = vmatpush1.bf16.msra.mxu0 %v617
          %639 = vmatprep.subr.bf16.mxu0 0
          %640 = vmatpush1.bf16.msra.mxu0 %v618
          %641 = vmatprep.subr.bf16.mxu0 0
          %642 = vmatpush1.bf16.msra.mxu0 %v619
          %643 = vmatprep.subr.bf16.mxu0 0
          %644 = vmatpush1.bf16.msra.mxu0 %v620
          %645 = vmatprep.subr.bf16.mxu0 0
          %646 = vmatpush1.bf16.msra.mxu0 0
          %647 = vmatprep.subr.bf16.mxu0 0
          %648 = vmatpush1.bf16.msra.mxu0 0
          %649 = vmatprep.subr.bf16.mxu0 0
          %650 = vmatpush1.bf16.msra.mxu0 0
          %651 = vmatprep.subr.bf16.mxu0 0
          %652 = vmatpush1.bf16.msra.mxu0 0
          %653 = vmatprep.subr.bf16.mxu0 0
          %654 = vmatpush1.bf16.msra.mxu0 0
          %655 = vmatprep.subr.bf16.mxu0 0
          %656 = vmatpush1.bf16.msra.mxu0 0
          %657 = vmatprep.subr.bf16.mxu0 0
          %658 = vmatpush1.bf16.msra.mxu0 0
          %659 = vmatprep.subr.bf16.mxu0 0
          %660 = vmatpush1.bf16.msra.mxu0 0
          %661 = vmatprep.mubr.bf16.mxu0 0
          %662 = vmatmul.mubr.bf16.gmra.mrb[0].mxu0 %v564
          %v663 = vpop.f32.mrb[0].mxu0
          %v664 = vadd.f32 0.0, %v663
          %v665 = vpop.f32.mrb[0].mxu0
          %v666 = vpop.f32.mrb[0].mxu0
          %v667 = vpop.f32.mrb[0].mxu0
          %668 = vdwg.mxu0
          %vm669 = vcmp.eq.s32.totalorder %v415, 1
          %v670 = vmul.f32 %v664, 5.656854
          %v671 = vld [vmem:[%s246] sm:$0xff]
          %v672 = vsel %vm669, 1, 0
          %673 = vset.pattern.permute.xlu0 0
          %674 = vperm.xlu0 %673, %v672
          %v675 = vpop.permute.xlu0 %674
          %vm676 = vcmp.eq.s32.totalorder %v675, 1
          %v677 = vsel %vm676, %v670, %v671
          %678 = vst [vmem:[%s246] sm:$0xff] %v677
        $region172: #{tpu_custom_call.1} parent=35 // pred_fallthru
          _
        %s679 = sadd.s32 %s416, 2
        %s680 = sld [smem:[#allocation9 + %s679]]
        %p681 = scmp.gt.s32.totalorder %s680, 0
        // Predicated region
        $region180: #{tpu_custom_call.1} parent=35 // pred_check
          %p682 = pneg %p681
        $region181: #{tpu_custom_call.1} parent=35 // pred_check_branch
          %684 = sbr.rel (%p682) target = $region183
        $region182: #{tpu_custom_call.1} parent=35 // pred_region
          // While loop
          $region184: #{tpu_custom_call.1} parent=182 // loop_pre_header
            _
          $region185: #{tpu_custom_call.1} parent=182 // loop_header
            %s686 = sphi 0, %s688
            %p687 = scmp.ge.s32.totalorder %s686, %s680
          $region186: #{tpu_custom_call.1} parent=182 // loop_header_branch
            %690 = sbr.rel (%p687) target = $region190
          $region187: #{tpu_custom_call.1} parent=182 // loop_body
            %s691 = scalar_lea.sflag [#allocation5], 2
            %s692 = smul.u32 1, 1
            %s693 = sshll.u32 %s692, 4
            %694 = dma.done %s691, %s693
          $region188: #{tpu_custom_call.1} parent=182 // loop_footer
            %s688 = sadd.s32 %s686, 1
          $region189: #{tpu_custom_call.1} parent=182 // loop_footer_branch
            %685 = sbr.rel target = $region185
          $region190: #{tpu_custom_call.1} parent=182 // loop_exit
            _
          %v695 = vld [vmem:[#allocation4] sm:$0xff]
          %v696 = vpack.c.bf16 %v695, %v695
          %v697 = vld [vmem:[#allocation15] sm:$0xf]
          %v698 = vld [vmem:[#allocation15 + $0x4] sm:$0xf]
          %v699 = vld [vmem:[#allocation15 + $0x8] sm:$0xf]
          %v700 = vld [vmem:[#allocation15 + $0xc] sm:$0xf]
          %v701 = vld [vmem:[#allocation15 + $0x10] sm:$0xf]
          %v702 = vld [vmem:[#allocation15 + $0x14] sm:$0xf]
          %v703 = vld [vmem:[#allocation15 + $0x18] sm:$0xf]
          %v704 = vld [vmem:[#allocation15 + $0x1c] sm:$0xf]
          %v705 = vld [vmem:[#allocation15 + $0x20] sm:$0xf]
          %v706 = vld [vmem:[#allocation15 + $0x24] sm:$0xf]
          %v707 = vld [vmem:[#allocation15 + $0x28] sm:$0xf]
          %v708 = vld [vmem:[#allocation15 + $0x2c] sm:$0xf]
          %v709 = vld [vmem:[#allocation15 + $0x30] sm:$0xf]
          %v710 = vld [vmem:[#allocation15 + $0x34] sm:$0xf]
          %v711 = vld [vmem:[#allocation15 + $0x38] sm:$0xf]
          %v712 = vld [vmem:[#allocation15 + $0x3c] sm:$0xf]
          %v729 = vunpack.c.l.b16 %v697
          %v730 = vunpack.c.l.b16 %v698
          %v731 = vunpack.c.l.b16 %v699
          %v732 = vunpack.c.l.b16 %v700
          %v733 = vunpack.c.l.b16 %v701
          %v734 = vunpack.c.l.b16 %v702
          %v735 = vunpack.c.l.b16 %v703
          %v736 = vunpack.c.l.b16 %v704
          %v737 = vunpack.c.l.b16 %v705
          %v738 = vunpack.c.l.b16 %v706
          %v739 = vunpack.c.l.b16 %v707
          %v740 = vunpack.c.l.b16 %v708
          %v741 = vunpack.c.l.b16 %v709
          %v742 = vunpack.c.l.b16 %v710
          %v743 = vunpack.c.l.b16 %v711
          %v744 = vunpack.c.l.b16 %v712
          %v745 = vpack.c.b16 %v730, %v729
          %v746 = vpack.c.b16 %v732, %v731
          %v747 = vpack.c.b16 %v734, %v733
          %v748 = vpack.c.b16 %v736, %v735
          %v749 = vpack.c.b16 %v738, %v737
          %v750 = vpack.c.b16 %v740, %v739
          %v751 = vpack.c.b16 %v742, %v741
          %v752 = vpack.c.b16 %v744, %v743
          %761 = vmatprep.subr.bf16.mxu0 0
          %762 = vmatpush1.bf16.msra.mxu0 %v745
          %763 = vmatprep.subr.bf16.mxu0 0
          %764 = vmatpush1.bf16.msra.mxu0 %v746
          %765 = vmatprep.subr.bf16.mxu0 0
          %766 = vmatpush1.bf16.msra.mxu0 %v747
          %767 = vmatprep.subr.bf16.mxu0 0
          %768 = vmatpush1.bf16.msra.mxu0 %v748
          %769 = vmatprep.subr.bf16.mxu0 0
          %770 = vmatpush1.bf16.msra.mxu0 %v749
          %771 = vmatprep.subr.bf16.mxu0 0
          %772 = vmatpush1.bf16.msra.mxu0 %v750
          %773 = vmatprep.subr.bf16.mxu0 0
          %774 = vmatpush1.bf16.msra.mxu0 %v751
          %775 = vmatprep.subr.bf16.mxu0 0
          %776 = vmatpush1.bf16.msra.mxu0 %v752
          %777 = vmatprep.subr.bf16.mxu0 0
          %778 = vmatpush1.bf16.msra.mxu0 0
          %779 = vmatprep.subr.bf16.mxu0 0
          %780 = vmatpush1.bf16.msra.mxu0 0
          %781 = vmatprep.subr.bf16.mxu0 0
          %782 = vmatpush1.bf16.msra.mxu0 0
          %783 = vmatprep.subr.bf16.mxu0 0
          %784 = vmatpush1.bf16.msra.mxu0 0
          %785 = vmatprep.subr.bf16.mxu0 0
          %786 = vmatpush1.bf16.msra.mxu0 0
          %787 = vmatprep.subr.bf16.mxu0 0
          %788 = vmatpush1.bf16.msra.mxu0 0
          %789 = vmatprep.subr.bf16.mxu0 0
          %790 = vmatpush1.bf16.msra.mxu0 0
          %791 = vmatprep.subr.bf16.mxu0 0
          %792 = vmatpush1.bf16.msra.mxu0 0
          %793 = vmatprep.mubr.bf16.mxu0 0
          %794 = vmatmul.mubr.bf16.gmra.mrb[0].mxu0 %v696
          %v795 = vpop.f32.mrb[0].mxu0
          %v796 = vadd.f32 0.0, %v795
          %v797 = vpop.f32.mrb[0].mxu0
          %v798 = vpop.f32.mrb[0].mxu0
          %v799 = vpop.f32.mrb[0].mxu0
          %800 = vdwg.mxu0
          %vm801 = vcmp.eq.s32.totalorder %v415, 2
          %v802 = vmul.f32 %v796, 5.656854
          %v803 = vld [vmem:[%s246] sm:$0xff]
          %v804 = vsel %vm801, 1, 0
          %805 = vset.pattern.permute.xlu0 0
          %806 = vperm.xlu0 %805, %v804
          %v807 = vpop.permute.xlu0 %806
          %vm808 = vcmp.eq.s32.totalorder %v807, 1
          %v809 = vsel %vm808, %v802, %v803
          %810 = vst [vmem:[%s246] sm:$0xff] %v809
        $region183: #{tpu_custom_call.1} parent=35 // pred_fallthru
          _
        %s811 = sand.u32 %s131, 1
        %s812 = scalar_lea.sflag [#allocation12], %s811
        %s813 = sand.u32 %s131, 1
        %s814 = smul.addr %s813, 8
        %s815 = scalar_lea.vmem [#allocation16], %s814
        // Predicated region
        $region191: #{tpu_custom_call.1} parent=35 // pred_check
          %p816 = pneg %p141
        $region192: #{tpu_custom_call.1} parent=35 // pred_check_branch
          %818 = sbr.rel (%p816) target = $region194
        $region193: #{tpu_custom_call.1} parent=35 // pred_region
          %s820 = ssub.s32 128, 128
          %821 = vsyncadd %s812, %s820
          %s822 = smul.addr %s34, 128
          %s823 = scalar_lea.hbm %s10, %s822
          %s825 = sshll.u32 %s815, 4
          %s826 = int_to_ptr.vmem [resolvable:$true] %s825
          %828 = dma.vmem_to_hbm [thread:$0]  %s826, 128, %s823, %s812
        $region194: #{tpu_custom_call.1} parent=35 // pred_fallthru
          _
      $region36: #{tpu_custom_call.1} parent=5 // pred_fallthru
        _
      %p829 = scmp.le.s32.totalorder 2, %s29
      // Predicated region
      $region195: #{tpu_custom_call.1} parent=5 // pred_check
        %p830 = pneg %p829
      $region196: #{tpu_custom_call.1} parent=5 // pred_check_branch
        %832 = sbr.rel (%p830) target = $region198
      $region197: #{tpu_custom_call.1} parent=5 // pred_region
        %s833 = ssub.s32 %s29, 2
        // Predicated region
        $region199: #{tpu_custom_call.1} parent=197 // pred_check
          %p834 = pneg %p147
        $region200: #{tpu_custom_call.1} parent=197 // pred_check_branch
          %836 = sbr.rel (%p834) target = $region202
        $region201: #{tpu_custom_call.1} parent=197 // pred_region
          %s837 = sand.u32 %s132, 1
          %s838 = scalar_lea.sflag [#allocation12], %s837
          %s839 = sand.u32 %s132, 1
          %s840 = smul.addr %s839, 8
          %s841 = scalar_lea.vmem [#allocation16], %s840
          %842 = dma.done %s838, 128
        $region202: #{tpu_custom_call.1} parent=197 // pred_fallthru
          _
      $region198: #{tpu_custom_call.1} parent=5 // pred_fallthru
        _
    $region6: #{tpu_custom_call.1} parent=1 // loop_footer
      %s33 = sadd.s32 1, %s29
    $region7: #{tpu_custom_call.1} parent=1 // loop_footer_branch
      %28 = sbr.rel target = $region3
    $region8: #{tpu_custom_call.1} parent=1 // loop_exit
      _
    %843 = vsyncpa [#allocation11], 1
    %s844 = scalar_lea.sflag [#allocation11], 1
    %845 = vsyncpa %s844, 1
    %846 = vsyncpa [#allocation14], 1
    %847 = vsyncpa [#allocation12], 1
    %s848 = scalar_lea.sflag [#allocation12], 1
    %849 = vsyncpa %s848, 1
  %850 = vsyncmov [#allocation5]
  %s851 = vpop.sfrf %850
  %p852 = scmp.eq.s32.totalorder %s851, 0
  %p853 = pneg %p852
  %855 = shalt.err (%p853)
  %s856 = scalar_lea.sflag [#allocation5], 1
  %857 = vsyncmov %s856
  %s858 = vpop.sfrf %857
  %p859 = scmp.eq.s32.totalorder %s858, 0
  %p860 = pneg %p859
  %862 = shalt.err (%p860)
  %s863 = scalar_lea.sflag [#allocation5], 2
  %864 = vsyncmov %s863
  %s865 = vpop.sfrf %864
  %p866 = scmp.eq.s32.totalorder %s865, 0
  %p867 = pneg %p866
  %869 = shalt.err (%p867)

</llo_original>
